<compile_context>
chip_gen: v7x
topology: tpu7x:2x2x1
jax: 0.10.0
libtpu: 0.0.40
codegen_flags: <defaults>
</compile_context>

<pallas_src>
import functools

import jax
import jax.numpy as jnp
from jax import lax
from jax.experimental import pallas as pl
from jax.experimental.pallas import tpu as pltpu


def _mod(x, m):
    """Vector modulo; bitwise AND when m is a power of two (true for H*W, W here)."""
    if (m & (m - 1)) == 0:
        return x & (m - 1)
    return x % m  # TODO(synk): non-power-of-two spatial sizes take the slower int-mod path


def _lane_roll(x, d):
    """out[:, l] = x[:, (l + d) % L] (circular; out-of-image lanes are masked by the caller)."""
    L = x.shape[-1]
    d = d % L
    if d == 0:
        return x
    return jnp.concatenate([x[:, d:], x[:, :d]], axis=1)


# ----------------------------------------------------------------------------
# Fused kernel: in-kernel im2col -> conv3x3+ReLU -> NCHW flatten -> fc1+ReLU -> fc2
# ----------------------------------------------------------------------------
def _convnet_fused_kernel(x_ref, wc_ref, bc_ref, w1_ref, b1_ref, w2_ref, b2_ref,
                          o_ref, flat_ref, *, cout, h, w, block_b):
    """One block of B samples per grid step.

    x_ref:   (Cin, B*H*W)   raw input, lane = b*H*W + y*W + x
    wc_ref:  (Cout, 9*Cin)  conv weights, row k = (kh*3+kw)*Cin + ci
    bc_ref:  (Cout, 1)
    w1_ref:  (Cout*H*W, hidden)  fc1 weights, NCHW row order
    b1_ref:  (1, hidden)
    w2_ref:  (hidden, classes)
    b2_ref:  (1, classes)
    o_ref:   (B, classes)
    flat_ref:(B, Cout*H*W)  VMEM scratch holding the NCHW-flattened activation
    """
    hw = h * w
    L = block_b * hw
    x2 = x_ref[...]                                      # (Cin, B*HW)

    # ---- in-kernel im2col: 9 taps from static lane shifts + boundary masks ----------
    lane = lax.broadcasted_iota(jnp.int32, (1, L), 1)
    hw_idx = _mod(lane, hw)                              # flat position inside the image
    wpos = _mod(lane, w)                                 # column inside the image row

    taps = []
    for kh in range(3):
        for kw in range(3):
            dy, dx = kh - 1, kw - 1
            t = _lane_roll(x2, dy * w + dx)              # out[:, l] = x2[:, l + dy*W + dx]
            conds = []
            if dy == -1:
                conds.append(hw_idx >= w)                # needs y-1 >= 0
            elif dy == 1:
                conds.append(hw_idx < hw - w)            # needs y+1 <= H-1
            if dx == -1:
                conds.append(wpos >= 1)                  # needs x-1 >= 0
            elif dx == 1:
                conds.append(wpos < w - 1)               # needs x+1 <= W-1
            if conds:
                m = conds[0]
                for extra in conds[1:]:
                    m = m & extra
                t = jnp.where(m, t, 0.0)
            taps.append(t)
    patches = jnp.concatenate(taps, axis=0)              # (9*Cin, B*HW)

    # ---- conv as ONE MXU matmul; lane-dense activation (Cout, B*HW) ------------------
    act = jnp.dot(wc_ref[...], patches, preferred_element_type=jnp.float32)
    act = jnp.maximum(act + bc_ref[...], 0.0)

    # ---- NCHW flatten: flat[b, c*HW + hw] = act[c, b*HW + hw] (aligned vreg copies) ---
    for c in range(cout):
        for b in range(block_b):
            flat_ref[b:b + 1, c * hw:(c + 1) * hw] = act[c:c + 1, b * hw:(b + 1) * hw]

    # ---- fc1 (single (B,2048)x(2048,32) matmul) + ReLU, fc2, batched store ------------
    h1 = jnp.dot(flat_ref[...], w1_ref[...], preferred_element_type=jnp.float32)
    h1 = jnp.maximum(h1 + b1_ref[...], 0.0)              # (B, hidden)
    out = jnp.dot(h1, w2_ref[...], preferred_element_type=jnp.float32) + b2_ref[...]
    o_ref[...] = out.astype(o_ref.dtype)                 # (B, classes)


# ----------------------------------------------------------------------------
# Wrapper: one cheap input transpose + single pallas_call
# ----------------------------------------------------------------------------
def convnet_forward(params, x_nchw, *, batch_block=64):
    """Full ConvNet forward.  x_nchw: (N, Cin, H, W) float32."""
    N, Cin, H, W = x_nchw.shape
    Cout = params["conv_w"].shape[-1]
    hidden = params["fc1_w"].shape[-1]
    classes = params["fc2_w"].shape[-1]
    HW = H * W

    if N <= batch_block:
        B, n_pad = N, N
    else:
        B = batch_block                                   # keep a multiple of 8
        n_pad = -(-N // B) * B
        x_nchw = jnp.pad(x_nchw, ((0, n_pad - N), (0, 0), (0, 0), (0, 0)))

    # Raw input, lane-major: (Cin, n_pad*HW) with lane = b*HW + y*W + x (one XLA transpose,
    # 4 KiB/sample -- no 9x im2col expansion written to HBM).
    x_lanes = jnp.transpose(x_nchw.reshape(n_pad, Cin, HW), (1, 0, 2))
    x_lanes = x_lanes.reshape(Cin, n_pad * HW).astype(jnp.float32)

    # Weight layout prep (once, in the wrapper).
    w_conv = params["conv_w"].reshape(9 * Cin, Cout).T    # (Cout, 9*Cin), row=(kh*3+kw)*Cin+ci
    b_conv = params["conv_b"].reshape(Cout, 1)
    w1 = params["fc1_w"]                                  # (Cout*HW, hidden), NCHW row order
    b1 = params["fc1_b"].reshape(1, hidden)
    w2 = params["fc2_w"]                                  # (hidden, classes)
    b2 = params["fc2_b"].reshape(1, classes)

    kern = functools.partial(_convnet_fused_kernel, cout=Cout, h=H, w=W, block_b=B)
    out = pl.pallas_call(
        kern,
        out_shape=jax.ShapeDtypeStruct((n_pad, classes), jnp.float32),
        grid=(n_pad // B,),
        in_specs=[
            pl.BlockSpec((Cin, B * HW), lambda n: (0, n)),
            pl.BlockSpec((Cout, 9 * Cin), lambda n: (0, 0)),   # constant index maps: weights
            pl.BlockSpec((Cout, 1), lambda n: (0, 0)),         # stay resident across steps
            pl.BlockSpec((Cout * HW, hidden), lambda n: (0, 0)),
            pl.BlockSpec((1, hidden), lambda n: (0, 0)),
            pl.BlockSpec((hidden, classes), lambda n: (0, 0)),
            pl.BlockSpec((1, classes), lambda n: (0, 0)),
        ],
        out_specs=pl.BlockSpec((B, classes), lambda n: (n, 0)),
        scratch_shapes=[pltpu.VMEM((B, Cout * HW), jnp.float32)],
        compiler_params=pltpu.CompilerParams(dimension_semantics=("parallel",)),
    )(x_lanes, w_conv, b_conv, w1, b1, w2, b2)
    return out[:N]


# ----------------------------------------------------------------------------
# Plain-JAX reference (correctness check)
# ----------------------------------------------------------------------------
def convnet_reference(params, x_nchw):
    x_nhwc = jnp.transpose(x_nchw, (0, 2, 3, 1))
    y = lax.conv_general_dilated(
        x_nhwc, params["conv_w"], window_strides=(1, 1), padding="SAME",
        dimension_numbers=("NHWC", "HWIO", "NHWC"))
    y = jnp.maximum(y + params["conv_b"], 0.0)
    y = jnp.transpose(y, (0, 3, 1, 2)).reshape(y.shape[0], -1)   # NCHW flatten
    y = jnp.maximum(y @ params["fc1_w"] + params["fc1_b"], 0.0)
    return y @ params["fc2_w"] + params["fc2_b"]


# ----------------------------------------------------------------------------
# Deterministic parameter init (synthetic; no checkpoint loading)
# ----------------------------------------------------------------------------
def init_params(key, cin, cout, h, w, hidden, n_classes):
    ks = jax.random.split(key, 6)
    flat = cout * h * w
    def u(k, shape, fan_in):
        lim = 1.0 / jnp.sqrt(jnp.float32(fan_in))
        return jax.random.uniform(k, shape, jnp.float32, -lim, lim)
    return {
        "conv_w": u(ks[0], (3, 3, cin, cout), 3 * 3 * cin),   # HWIO
        "conv_b": u(ks[1], (cout,), 3 * 3 * cin),
        "fc1_w":  u(ks[2], (flat, hidden), flat),
        "fc1_b":  u(ks[3], (hidden,), flat),
        "fc2_w":  u(ks[4], (hidden, n_classes), hidden),
        "fc2_b":  u(ks[5], (n_classes,), hidden),
    }


if __name__ == "__main__":
    key = jax.random.PRNGKey(0)
    kp, kx = jax.random.split(key)

    N, CIN, H, W = 2, 4, 16, 16
    COUT, HIDDEN, CLASSES = 8, 32, 10

    params = init_params(kp, CIN, COUT, H, W, HIDDEN, CLASSES)
    x = jax.random.normal(kx, (N, CIN, H, W), jnp.float32)

    out = jax.block_until_ready(convnet_forward(params, x))
    ref = jax.block_until_ready(convnet_reference(params, x))

    assert out.shape == (N, CLASSES), out.shape
    assert jnp.allclose(out, ref, atol=1e-4, rtol=1e-4), "mismatch vs reference"

    print("KERNEL_OK")
</pallas_src>

<mosaic_0001>
module attributes {stable_mosaic.version = 11 : i64} {
  func.func @_convnet_fused_kernel(%arg0: i32, %arg1: memref<4x512xf32, #tpu.memory_space<vmem>>, %arg2: memref<8x36xf32, #tpu.memory_space<vmem>>, %arg3: memref<8x1xf32, #tpu.memory_space<vmem>>, %arg4: memref<2048x32xf32, #tpu.memory_space<vmem>>, %arg5: memref<1x32xf32, #tpu.memory_space<vmem>>, %arg6: memref<32x10xf32, #tpu.memory_space<vmem>>, %arg7: memref<1x10xf32, #tpu.memory_space<vmem>>, %arg8: memref<2x10xf32, #tpu.memory_space<vmem>>, %arg9: memref<2x2048xf32, #tpu.memory_space<vmem>>) attributes {dimension_semantics = [#tpu.dimension_semantics<parallel>], iteration_bounds = array<i64: 1>, scalar_prefetch = 0 : i64, scratch_operands = 1 : i64, tpu.core_type = #tpu.core_type<tc>, window_params = [{transform_indices = @transform_0, window_bounds = array<i64: 4, 512>}, {pipeline_mode = #tpu.pipeline_mode<synchronous>, transform_indices = @transform_1, window_bounds = array<i64: 8, 36>}, {pipeline_mode = #tpu.pipeline_mode<synchronous>, transform_indices = @transform_2, window_bounds = array<i64: 8, 1>}, {pipeline_mode = #tpu.pipeline_mode<synchronous>, transform_indices = @transform_3, window_bounds = array<i64: 2048, 32>}, {pipeline_mode = #tpu.pipeline_mode<synchronous>, transform_indices = @transform_4, window_bounds = array<i64: 1, 32>}, {pipeline_mode = #tpu.pipeline_mode<synchronous>, transform_indices = @transform_5, window_bounds = array<i64: 32, 10>}, {pipeline_mode = #tpu.pipeline_mode<synchronous>, transform_indices = @transform_6, window_bounds = array<i64: 1, 10>}, {transform_indices = @transform_7, window_bounds = array<i64: 2, 10>}]} {
    %c0 = arith.constant 0 : index
    %c0_0 = arith.constant 0 : index
    %0 = vector.load %arg1[%c0, %c0_0] : memref<4x512xf32, #tpu.memory_space<vmem>>, vector<4x512xf32>
    %1 = tpu.iota {dimensions = array<i32: 1>} : vector<1x512xi32>
    %c255_i32 = arith.constant 255 : i32
    %2 = vector.broadcast %c255_i32 : i32 to vector<1x512xi32>
    %3 = arith.andi %1, %2 : vector<1x512xi32>
    %c15_i32 = arith.constant 15 : i32
    %4 = vector.broadcast %c15_i32 : i32 to vector<1x512xi32>
    %5 = arith.andi %1, %4 : vector<1x512xi32>
    %6 = vector.extract_strided_slice %0 {offsets = [0, 495], sizes = [4, 17], strides = [1, 1]} : vector<4x512xf32> to vector<4x17xf32>
    %7 = vector.extract_strided_slice %0 {offsets = [0, 0], sizes = [4, 495], strides = [1, 1]} : vector<4x512xf32> to vector<4x495xf32>
    %8 = tpu.concatenate %6, %7 in 1 : vector<4x17xf32>, vector<4x495xf32> -> vector<4x512xf32>
    %c16_i32 = arith.constant 16 : i32
    %9 = vector.broadcast %c16_i32 : i32 to vector<1x512xi32>
    %10 = arith.cmpi sge, %3, %9 : vector<1x512xi32>
    %c1_i32 = arith.constant 1 : i32
    %11 = vector.broadcast %c1_i32 : i32 to vector<1x512xi32>
    %12 = arith.cmpi sge, %5, %11 : vector<1x512xi32>
    %13 = arith.andi %10, %12 : vector<1x512xi1>
    %cst = arith.constant 0.000000e+00 : f32
    %14 = vector.shape_cast %13 : vector<1x512xi1> to vector<1x512xi1>
    %15 = vector.broadcast %14 : vector<1x512xi1> to vector<4x512xi1>
    %16 = vector.broadcast %cst : f32 to vector<4x512xf32>
    %17 = arith.select %15, %8, %16 : vector<4x512xi1>, vector<4x512xf32>
    %18 = vector.extract_strided_slice %0 {offsets = [0, 496], sizes = [4, 16], strides = [1, 1]} : vector<4x512xf32> to vector<4x16xf32>
    %19 = vector.extract_strided_slice %0 {offsets = [0, 0], sizes = [4, 496], strides = [1, 1]} : vector<4x512xf32> to vector<4x496xf32>
    %20 = tpu.concatenate %18, %19 in 1 : vector<4x16xf32>, vector<4x496xf32> -> vector<4x512xf32>
    %c16_i32_1 = arith.constant 16 : i32
    %21 = vector.broadcast %c16_i32_1 : i32 to vector<1x512xi32>
    %22 = arith.cmpi sge, %3, %21 : vector<1x512xi32>
    %cst_2 = arith.constant 0.000000e+00 : f32
    %23 = vector.shape_cast %22 : vector<1x512xi1> to vector<1x512xi1>
    %24 = vector.broadcast %23 : vector<1x512xi1> to vector<4x512xi1>
    %25 = vector.broadcast %cst_2 : f32 to vector<4x512xf32>
    %26 = arith.select %24, %20, %25 : vector<4x512xi1>, vector<4x512xf32>
    %27 = vector.extract_strided_slice %0 {offsets = [0, 497], sizes = [4, 15], strides = [1, 1]} : vector<4x512xf32> to vector<4x15xf32>
    %28 = vector.extract_strided_slice %0 {offsets = [0, 0], sizes = [4, 497], strides = [1, 1]} : vector<4x512xf32> to vector<4x497xf32>
    %29 = tpu.concatenate %27, %28 in 1 : vector<4x15xf32>, vector<4x497xf32> -> vector<4x512xf32>
    %c16_i32_3 = arith.constant 16 : i32
    %30 = vector.broadcast %c16_i32_3 : i32 to vector<1x512xi32>
    %31 = arith.cmpi sge, %3, %30 : vector<1x512xi32>
    %c15_i32_4 = arith.constant 15 : i32
    %32 = vector.broadcast %c15_i32_4 : i32 to vector<1x512xi32>
    %33 = arith.cmpi slt, %5, %32 : vector<1x512xi32>
    %34 = arith.andi %31, %33 : vector<1x512xi1>
    %cst_5 = arith.constant 0.000000e+00 : f32
    %35 = vector.shape_cast %34 : vector<1x512xi1> to vector<1x512xi1>
    %36 = vector.broadcast %35 : vector<1x512xi1> to vector<4x512xi1>
    %37 = vector.broadcast %cst_5 : f32 to vector<4x512xf32>
    %38 = arith.select %36, %29, %37 : vector<4x512xi1>, vector<4x512xf32>
    %39 = vector.extract_strided_slice %0 {offsets = [0, 511], sizes = [4, 1], strides = [1, 1]} : vector<4x512xf32> to vector<4x1xf32>
    %40 = vector.extract_strided_slice %0 {offsets = [0, 0], sizes = [4, 511], strides = [1, 1]} : vector<4x512xf32> to vector<4x511xf32>
    %41 = tpu.concatenate %39, %40 in 1 : vector<4x1xf32>, vector<4x511xf32> -> vector<4x512xf32>
    %c1_i32_6 = arith.constant 1 : i32
    %42 = vector.broadcast %c1_i32_6 : i32 to vector<1x512xi32>
    %43 = arith.cmpi sge, %5, %42 : vector<1x512xi32>
    %cst_7 = arith.constant 0.000000e+00 : f32
    %44 = vector.shape_cast %43 : vector<1x512xi1> to vector<1x512xi1>
    %45 = vector.broadcast %44 : vector<1x512xi1> to vector<4x512xi1>
    %46 = vector.broadcast %cst_7 : f32 to vector<4x512xf32>
    %47 = arith.select %45, %41, %46 : vector<4x512xi1>, vector<4x512xf32>
    %48 = vector.extract_strided_slice %0 {offsets = [0, 1], sizes = [4, 511], strides = [1, 1]} : vector<4x512xf32> to vector<4x511xf32>
    %49 = vector.extract_strided_slice %0 {offsets = [0, 0], sizes = [4, 1], strides = [1, 1]} : vector<4x512xf32> to vector<4x1xf32>
    %50 = tpu.concatenate %48, %49 in 1 : vector<4x511xf32>, vector<4x1xf32> -> vector<4x512xf32>
    %c15_i32_8 = arith.constant 15 : i32
    %51 = vector.broadcast %c15_i32_8 : i32 to vector<1x512xi32>
    %52 = arith.cmpi slt, %5, %51 : vector<1x512xi32>
    %cst_9 = arith.constant 0.000000e+00 : f32
    %53 = vector.shape_cast %52 : vector<1x512xi1> to vector<1x512xi1>
    %54 = vector.broadcast %53 : vector<1x512xi1> to vector<4x512xi1>
    %55 = vector.broadcast %cst_9 : f32 to vector<4x512xf32>
    %56 = arith.select %54, %50, %55 : vector<4x512xi1>, vector<4x512xf32>
    %57 = vector.extract_strided_slice %0 {offsets = [0, 15], sizes = [4, 497], strides = [1, 1]} : vector<4x512xf32> to vector<4x497xf32>
    %58 = vector.extract_strided_slice %0 {offsets = [0, 0], sizes = [4, 15], strides = [1, 1]} : vector<4x512xf32> to vector<4x15xf32>
    %59 = tpu.concatenate %57, %58 in 1 : vector<4x497xf32>, vector<4x15xf32> -> vector<4x512xf32>
    %c240_i32 = arith.constant 240 : i32
    %60 = vector.broadcast %c240_i32 : i32 to vector<1x512xi32>
    %61 = arith.cmpi slt, %3, %60 : vector<1x512xi32>
    %c1_i32_10 = arith.constant 1 : i32
    %62 = vector.broadcast %c1_i32_10 : i32 to vector<1x512xi32>
    %63 = arith.cmpi sge, %5, %62 : vector<1x512xi32>
    %64 = arith.andi %61, %63 : vector<1x512xi1>
    %cst_11 = arith.constant 0.000000e+00 : f32
    %65 = vector.shape_cast %64 : vector<1x512xi1> to vector<1x512xi1>
    %66 = vector.broadcast %65 : vector<1x512xi1> to vector<4x512xi1>
    %67 = vector.broadcast %cst_11 : f32 to vector<4x512xf32>
    %68 = arith.select %66, %59, %67 : vector<4x512xi1>, vector<4x512xf32>
    %69 = vector.extract_strided_slice %0 {offsets = [0, 16], sizes = [4, 496], strides = [1, 1]} : vector<4x512xf32> to vector<4x496xf32>
    %70 = vector.extract_strided_slice %0 {offsets = [0, 0], sizes = [4, 16], strides = [1, 1]} : vector<4x512xf32> to vector<4x16xf32>
    %71 = tpu.concatenate %69, %70 in 1 : vector<4x496xf32>, vector<4x16xf32> -> vector<4x512xf32>
    %c240_i32_12 = arith.constant 240 : i32
    %72 = vector.broadcast %c240_i32_12 : i32 to vector<1x512xi32>
    %73 = arith.cmpi slt, %3, %72 : vector<1x512xi32>
    %cst_13 = arith.constant 0.000000e+00 : f32
    %74 = vector.shape_cast %73 : vector<1x512xi1> to vector<1x512xi1>
    %75 = vector.broadcast %74 : vector<1x512xi1> to vector<4x512xi1>
    %76 = vector.broadcast %cst_13 : f32 to vector<4x512xf32>
    %77 = arith.select %75, %71, %76 : vector<4x512xi1>, vector<4x512xf32>
    %78 = vector.extract_strided_slice %0 {offsets = [0, 17], sizes = [4, 495], strides = [1, 1]} : vector<4x512xf32> to vector<4x495xf32>
    %79 = vector.extract_strided_slice %0 {offsets = [0, 0], sizes = [4, 17], strides = [1, 1]} : vector<4x512xf32> to vector<4x17xf32>
    %80 = tpu.concatenate %78, %79 in 1 : vector<4x495xf32>, vector<4x17xf32> -> vector<4x512xf32>
    %c240_i32_14 = arith.constant 240 : i32
    %81 = vector.broadcast %c240_i32_14 : i32 to vector<1x512xi32>
    %82 = arith.cmpi slt, %3, %81 : vector<1x512xi32>
    %c15_i32_15 = arith.constant 15 : i32
    %83 = vector.broadcast %c15_i32_15 : i32 to vector<1x512xi32>
    %84 = arith.cmpi slt, %5, %83 : vector<1x512xi32>
    %85 = arith.andi %82, %84 : vector<1x512xi1>
    %cst_16 = arith.constant 0.000000e+00 : f32
    %86 = vector.shape_cast %85 : vector<1x512xi1> to vector<1x512xi1>
    %87 = vector.broadcast %86 : vector<1x512xi1> to vector<4x512xi1>
    %88 = vector.broadcast %cst_16 : f32 to vector<4x512xf32>
    %89 = arith.select %87, %80, %88 : vector<4x512xi1>, vector<4x512xf32>
    %90 = tpu.concatenate %17, %26, %38, %47, %0, %56, %68, %77, %89 in 0 : vector<4x512xf32>, vector<4x512xf32>, vector<4x512xf32>, vector<4x512xf32>, vector<4x512xf32>, vector<4x512xf32>, vector<4x512xf32>, vector<4x512xf32>, vector<4x512xf32> -> vector<36x512xf32>
    %c0_17 = arith.constant 0 : index
    %c0_18 = arith.constant 0 : index
    %91 = vector.load %arg2[%c0_17, %c0_18] : memref<8x36xf32, #tpu.memory_space<vmem>>, vector<8x36xf32>
    %cst_19 = arith.constant dense<0.000000e+00> : vector<8x512xf32>
    %92 = tpu.matmul %91, %90, %cst_19 {dimension_numbers = #tpu.dot_dimension_numbers<[1], [0], [0], [1], [0, 0, 1, 1], [], []>} : vector<8x36xf32>, vector<36x512xf32>, vector<8x512xf32> -> vector<8x512xf32>
    %c0_20 = arith.constant 0 : index
    %c0_21 = arith.constant 0 : index
    %93 = vector.load %arg3[%c0_20, %c0_21] : memref<8x1xf32, #tpu.memory_space<vmem>>, vector<8x1xf32>
    %94 = vector.broadcast %93 : vector<8x1xf32> to vector<8x512xf32>
    %95 = arith.addf %92, %94 : vector<8x512xf32>
    %cst_22 = arith.constant 0.000000e+00 : f32
    %96 = vector.broadcast %cst_22 : f32 to vector<8x512xf32>
    %97 = arith.maximumf %95, %96 : vector<8x512xf32>
    %98 = vector.extract_strided_slice %97 {offsets = [0, 0], sizes = [1, 256], strides = [1, 1]} : vector<8x512xf32> to vector<1x256xf32>
    %c0_23 = arith.constant 0 : index
    %c0_24 = arith.constant 0 : index
    %99 = vector.load %arg9[%c0_23, %c0_24] : memref<2x2048xf32, #tpu.memory_space<vmem>>, vector<1x256xf32>
    tpu.vector_store %arg9[%c0_23, %c0_24], %98 {strides = array<i32>} : memref<2x2048xf32, #tpu.memory_space<vmem>>, vector<1x256xf32>,
    %100 = vector.extract_strided_slice %97 {offsets = [0, 256], sizes = [1, 256], strides = [1, 1]} : vector<8x512xf32> to vector<1x256xf32>
    %c1 = arith.constant 1 : index
    %c0_25 = arith.constant 0 : index
    %101 = vector.load %arg9[%c1, %c0_25] : memref<2x2048xf32, #tpu.memory_space<vmem>>, vector<1x256xf32>
    tpu.vector_store %arg9[%c1, %c0_25], %100 {strides = array<i32>} : memref<2x2048xf32, #tpu.memory_space<vmem>>, vector<1x256xf32>,
    %102 = vector.extract_strided_slice %97 {offsets = [1, 0], sizes = [1, 256], strides = [1, 1]} : vector<8x512xf32> to vector<1x256xf32>
    %c0_26 = arith.constant 0 : index
    %c256 = arith.constant 256 : index
    %103 = vector.load %arg9[%c0_26, %c256] : memref<2x2048xf32, #tpu.memory_space<vmem>>, vector<1x256xf32>
    tpu.vector_store %arg9[%c0_26, %c256], %102 {strides = array<i32>} : memref<2x2048xf32, #tpu.memory_space<vmem>>, vector<1x256xf32>,
    %104 = vector.extract_strided_slice %97 {offsets = [1, 256], sizes = [1, 256], strides = [1, 1]} : vector<8x512xf32> to vector<1x256xf32>
    %c1_27 = arith.constant 1 : index
    %c256_28 = arith.constant 256 : index
    %105 = vector.load %arg9[%c1_27, %c256_28] : memref<2x2048xf32, #tpu.memory_space<vmem>>, vector<1x256xf32>
    tpu.vector_store %arg9[%c1_27, %c256_28], %104 {strides = array<i32>} : memref<2x2048xf32, #tpu.memory_space<vmem>>, vector<1x256xf32>,
    %106 = vector.extract_strided_slice %97 {offsets = [2, 0], sizes = [1, 256], strides = [1, 1]} : vector<8x512xf32> to vector<1x256xf32>
    %c0_29 = arith.constant 0 : index
    %c512 = arith.constant 512 : index
    %107 = vector.load %arg9[%c0_29, %c512] : memref<2x2048xf32, #tpu.memory_space<vmem>>, vector<1x256xf32>
    tpu.vector_store %arg9[%c0_29, %c512], %106 {strides = array<i32>} : memref<2x2048xf32, #tpu.memory_space<vmem>>, vector<1x256xf32>,
    %108 = vector.extract_strided_slice %97 {offsets = [2, 256], sizes = [1, 256], strides = [1, 1]} : vector<8x512xf32> to vector<1x256xf32>
    %c1_30 = arith.constant 1 : index
    %c512_31 = arith.constant 512 : index
    %109 = vector.load %arg9[%c1_30, %c512_31] : memref<2x2048xf32, #tpu.memory_space<vmem>>, vector<1x256xf32>
    tpu.vector_store %arg9[%c1_30, %c512_31], %108 {strides = array<i32>} : memref<2x2048xf32, #tpu.memory_space<vmem>>, vector<1x256xf32>,
    %110 = vector.extract_strided_slice %97 {offsets = [3, 0], sizes = [1, 256], strides = [1, 1]} : vector<8x512xf32> to vector<1x256xf32>
    %c0_32 = arith.constant 0 : index
    %c768 = arith.constant 768 : index
    %111 = vector.load %arg9[%c0_32, %c768] : memref<2x2048xf32, #tpu.memory_space<vmem>>, vector<1x256xf32>
    tpu.vector_store %arg9[%c0_32, %c768], %110 {strides = array<i32>} : memref<2x2048xf32, #tpu.memory_space<vmem>>, vector<1x256xf32>,
    %112 = vector.extract_strided_slice %97 {offsets = [3, 256], sizes = [1, 256], strides = [1, 1]} : vector<8x512xf32> to vector<1x256xf32>
    %c1_33 = arith.constant 1 : index
    %c768_34 = arith.constant 768 : index
    %113 = vector.load %arg9[%c1_33, %c768_34] : memref<2x2048xf32, #tpu.memory_space<vmem>>, vector<1x256xf32>
    tpu.vector_store %arg9[%c1_33, %c768_34], %112 {strides = array<i32>} : memref<2x2048xf32, #tpu.memory_space<vmem>>, vector<1x256xf32>,
    %114 = vector.extract_strided_slice %97 {offsets = [4, 0], sizes = [1, 256], strides = [1, 1]} : vector<8x512xf32> to vector<1x256xf32>
    %c0_35 = arith.constant 0 : index
    %c1024 = arith.constant 1024 : index
    %115 = vector.load %arg9[%c0_35, %c1024] : memref<2x2048xf32, #tpu.memory_space<vmem>>, vector<1x256xf32>
    tpu.vector_store %arg9[%c0_35, %c1024], %114 {strides = array<i32>} : memref<2x2048xf32, #tpu.memory_space<vmem>>, vector<1x256xf32>,
    %116 = vector.extract_strided_slice %97 {offsets = [4, 256], sizes = [1, 256], strides = [1, 1]} : vector<8x512xf32> to vector<1x256xf32>
    %c1_36 = arith.constant 1 : index
    %c1024_37 = arith.constant 1024 : index
    %117 = vector.load %arg9[%c1_36, %c1024_37] : memref<2x2048xf32, #tpu.memory_space<vmem>>, vector<1x256xf32>
    tpu.vector_store %arg9[%c1_36, %c1024_37], %116 {strides = array<i32>} : memref<2x2048xf32, #tpu.memory_space<vmem>>, vector<1x256xf32>,
    %118 = vector.extract_strided_slice %97 {offsets = [5, 0], sizes = [1, 256], strides = [1, 1]} : vector<8x512xf32> to vector<1x256xf32>
    %c0_38 = arith.constant 0 : index
    %c1280 = arith.constant 1280 : index
    %119 = vector.load %arg9[%c0_38, %c1280] : memref<2x2048xf32, #tpu.memory_space<vmem>>, vector<1x256xf32>
    tpu.vector_store %arg9[%c0_38, %c1280], %118 {strides = array<i32>} : memref<2x2048xf32, #tpu.memory_space<vmem>>, vector<1x256xf32>,
    %120 = vector.extract_strided_slice %97 {offsets = [5, 256], sizes = [1, 256], strides = [1, 1]} : vector<8x512xf32> to vector<1x256xf32>
    %c1_39 = arith.constant 1 : index
    %c1280_40 = arith.constant 1280 : index
    %121 = vector.load %arg9[%c1_39, %c1280_40] : memref<2x2048xf32, #tpu.memory_space<vmem>>, vector<1x256xf32>
    tpu.vector_store %arg9[%c1_39, %c1280_40], %120 {strides = array<i32>} : memref<2x2048xf32, #tpu.memory_space<vmem>>, vector<1x256xf32>,
    %122 = vector.extract_strided_slice %97 {offsets = [6, 0], sizes = [1, 256], strides = [1, 1]} : vector<8x512xf32> to vector<1x256xf32>
    %c0_41 = arith.constant 0 : index
    %c1536 = arith.constant 1536 : index
    %123 = vector.load %arg9[%c0_41, %c1536] : memref<2x2048xf32, #tpu.memory_space<vmem>>, vector<1x256xf32>
    tpu.vector_store %arg9[%c0_41, %c1536], %122 {strides = array<i32>} : memref<2x2048xf32, #tpu.memory_space<vmem>>, vector<1x256xf32>,
    %124 = vector.extract_strided_slice %97 {offsets = [6, 256], sizes = [1, 256], strides = [1, 1]} : vector<8x512xf32> to vector<1x256xf32>
    %c1_42 = arith.constant 1 : index
    %c1536_43 = arith.constant 1536 : index
    %125 = vector.load %arg9[%c1_42, %c1536_43] : memref<2x2048xf32, #tpu.memory_space<vmem>>, vector<1x256xf32>
    tpu.vector_store %arg9[%c1_42, %c1536_43], %124 {strides = array<i32>} : memref<2x2048xf32, #tpu.memory_space<vmem>>, vector<1x256xf32>,
    %126 = vector.extract_strided_slice %97 {offsets = [7, 0], sizes = [1, 256], strides = [1, 1]} : vector<8x512xf32> to vector<1x256xf32>
    %c0_44 = arith.constant 0 : index
    %c1792 = arith.constant 1792 : index
    %127 = vector.load %arg9[%c0_44, %c1792] : memref<2x2048xf32, #tpu.memory_space<vmem>>, vector<1x256xf32>
    tpu.vector_store %arg9[%c0_44, %c1792], %126 {strides = array<i32>} : memref<2x2048xf32, #tpu.memory_space<vmem>>, vector<1x256xf32>,
    %128 = vector.extract_strided_slice %97 {offsets = [7, 256], sizes = [1, 256], strides = [1, 1]} : vector<8x512xf32> to vector<1x256xf32>
    %c1_45 = arith.constant 1 : index
    %c1792_46 = arith.constant 1792 : index
    %129 = vector.load %arg9[%c1_45, %c1792_46] : memref<2x2048xf32, #tpu.memory_space<vmem>>, vector<1x256xf32>
    tpu.vector_store %arg9[%c1_45, %c1792_46], %128 {strides = array<i32>} : memref<2x2048xf32, #tpu.memory_space<vmem>>, vector<1x256xf32>,
    %c0_47 = arith.constant 0 : index
    %c0_48 = arith.constant 0 : index
    %130 = vector.load %arg9[%c0_47, %c0_48] : memref<2x2048xf32, #tpu.memory_space<vmem>>, vector<2x2048xf32>
    %c0_49 = arith.constant 0 : index
    %c0_50 = arith.constant 0 : index
    %131 = vector.load %arg4[%c0_49, %c0_50] : memref<2048x32xf32, #tpu.memory_space<vmem>>, vector<2048x32xf32>
    %cst_51 = arith.constant dense<0.000000e+00> : vector<2x32xf32>
    %132 = tpu.matmul %130, %131, %cst_51 {dimension_numbers = #tpu.dot_dimension_numbers<[1], [0], [0], [1], [0, 0, 1, 1], [], []>} : vector<2x2048xf32>, vector<2048x32xf32>, vector<2x32xf32> -> vector<2x32xf32>
    %c0_52 = arith.constant 0 : index
    %c0_53 = arith.constant 0 : index
    %133 = vector.load %arg5[%c0_52, %c0_53] : memref<1x32xf32, #tpu.memory_space<vmem>>, vector<1x32xf32>
    %134 = vector.broadcast %133 : vector<1x32xf32> to vector<2x32xf32>
    %135 = arith.addf %132, %134 : vector<2x32xf32>
    %cst_54 = arith.constant 0.000000e+00 : f32
    %136 = vector.broadcast %cst_54 : f32 to vector<2x32xf32>
    %137 = arith.maximumf %135, %136 : vector<2x32xf32>
    %c0_55 = arith.constant 0 : index
    %c0_56 = arith.constant 0 : index
    %138 = vector.load %arg6[%c0_55, %c0_56] : memref<32x10xf32, #tpu.memory_space<vmem>>, vector<32x10xf32>
    %cst_57 = arith.constant dense<0.000000e+00> : vector<2x10xf32>
    %139 = tpu.matmul %137, %138, %cst_57 {dimension_numbers = #tpu.dot_dimension_numbers<[1], [0], [0], [1], [0, 0, 1, 1], [], []>} : vector<2x32xf32>, vector<32x10xf32>, vector<2x10xf32> -> vector<2x10xf32>
    %c0_58 = arith.constant 0 : index
    %c0_59 = arith.constant 0 : index
    %140 = vector.load %arg7[%c0_58, %c0_59] : memref<1x10xf32, #tpu.memory_space<vmem>>, vector<1x10xf32>
    %141 = vector.broadcast %140 : vector<1x10xf32> to vector<2x10xf32>
    %142 = arith.addf %139, %141 : vector<2x10xf32>
    %c0_60 = arith.constant 0 : index
    %c0_61 = arith.constant 0 : index
    %143 = vector.load %arg8[%c0_60, %c0_61] : memref<2x10xf32, #tpu.memory_space<vmem>>, vector<2x10xf32>
    tpu.vector_store %arg8[%c0_60, %c0_61], %142 {strides = array<i32>} : memref<2x10xf32, #tpu.memory_space<vmem>>, vector<2x10xf32>,
    return
  }
  func.func @transform_0(%arg0: i32) -> (i32, i32) {
    %c0_i32 = arith.constant 0 : i32
    %c0_i32_0 = arith.constant 0 : i32
    return %c0_i32, %arg0 : i32, i32
  }
  func.func @transform_1(%arg0: i32) -> (i32, i32) {
    %c0_i32 = arith.constant 0 : i32
    %c0_i32_0 = arith.constant 0 : i32
    %c0_i32_1 = arith.constant 0 : i32
    return %c0_i32, %c0_i32_0 : i32, i32
  }
  func.func @transform_2(%arg0: i32) -> (i32, i32) {
    %c0_i32 = arith.constant 0 : i32
    %c0_i32_0 = arith.constant 0 : i32
    %c0_i32_1 = arith.constant 0 : i32
    return %c0_i32, %c0_i32_0 : i32, i32
  }
  func.func @transform_3(%arg0: i32) -> (i32, i32) {
    %c0_i32 = arith.constant 0 : i32
    %c0_i32_0 = arith.constant 0 : i32
    %c0_i32_1 = arith.constant 0 : i32
    return %c0_i32, %c0_i32_0 : i32, i32
  }
  func.func @transform_4(%arg0: i32) -> (i32, i32) {
    %c0_i32 = arith.constant 0 : i32
    %c0_i32_0 = arith.constant 0 : i32
    %c0_i32_1 = arith.constant 0 : i32
    return %c0_i32, %c0_i32_0 : i32, i32
  }
  func.func @transform_5(%arg0: i32) -> (i32, i32) {
    %c0_i32 = arith.constant 0 : i32
    %c0_i32_0 = arith.constant 0 : i32
    %c0_i32_1 = arith.constant 0 : i32
    return %c0_i32, %c0_i32_0 : i32, i32
  }
  func.func @transform_6(%arg0: i32) -> (i32, i32) {
    %c0_i32 = arith.constant 0 : i32
    %c0_i32_0 = arith.constant 0 : i32
    %c0_i32_1 = arith.constant 0 : i32
    return %c0_i32, %c0_i32_0 : i32, i32
  }
  func.func @transform_7(%arg0: i32) -> (i32, i32) {
    %c0_i32 = arith.constant 0 : i32
    %c0_i32_0 = arith.constant 0 : i32
    return %arg0, %c0_i32 : i32, i32
  }
}

</mosaic_0001>

<llo_original>
// kernel: tpu_custom_call.1
$region0: #{tpu_custom_call.1}
  #allocation0 [shape = 'u32[]', space=smem, size = 0x4, offset = 0x4, fixed_abs, tag = 'smem constant byte address 0x4 - core index']
  #allocation1 [shape = 'u32[144,128]{1,0:T(1,128)}', space=vmem, size = 0x12000, scoped, tag = 'internal scratch']
  #allocation2 [shape = 'f32[2,2048]{1,0:T(2,128)}', space=vmem, size = 0x4000, scoped, tag = 'scratch operand']
  %s0 = inlined_call_operand.vmem [shape: f32[4,512], index: 0, kind: input, shape index: {}]
  %s1 = inlined_call_operand.vmem [shape: f32[8,36], index: 1, kind: input, shape index: {}]
  %s2 = inlined_call_operand.vmem [shape: f32[8,1], index: 2, kind: input, shape index: {}]
  %s3 = inlined_call_operand.vmem [shape: f32[2048,32], index: 3, kind: input, shape index: {}]
  %s4 = inlined_call_operand.vmem [shape: f32[1,32], index: 4, kind: input, shape index: {}]
  %s5 = inlined_call_operand.vmem [shape: f32[32,10], index: 5, kind: input, shape index: {}]
  %s6 = inlined_call_operand.vmem [shape: f32[1,10], index: 6, kind: input, shape index: {}]
  %s7 = inlined_call_operand.hbm [shape: f32[2,10], index: 7, kind: output, shape index: {}]
  %s8 = sld [smem:[#allocation0]]
  $region38: #{tpu_custom_call.1} parent=0
    _
  %s10 = ssub.s32 1, %s8
  %s11 = scalar_select 0, %s10, %s8
  $region1: #{tpu_custom_call.1} parent=0
    #allocation3 [shape = 'u8[1024]{0}', space=vmem, size = 0x400, scoped, tag = 'output window, operand 0, single buffered']
    #allocation4 [shape = 's32[1]{0}', space=sflag, size = 0x4, scoped, tag = 'scoped memory for tpu_custom_call.1']
    %12 = vsyncpa [#allocation4], 0
    // Predicated region
    $region2: #{tpu_custom_call.1} parent=1 // pred_check
      _
    $region3: #{tpu_custom_call.1} parent=1 // pred_check_branch
      %14 = sbr.rel (0) target = $region5
    $region4: #{tpu_custom_call.1} parent=1 // pred_region
      _
    $region5: #{tpu_custom_call.1} parent=1 // pred_fallthru
      _
    // Predicated region
    $region6: #{tpu_custom_call.1} parent=1 // pred_check
      _
    $region7: #{tpu_custom_call.1} parent=1 // pred_check_branch
      %16 = sbr.rel (0) target = $region9
    $region8: #{tpu_custom_call.1} parent=1 // pred_region
      _
    $region9: #{tpu_custom_call.1} parent=1 // pred_fallthru
      _
    // Predicated region
    $region10: #{tpu_custom_call.1} parent=1 // pred_check
      _
    $region11: #{tpu_custom_call.1} parent=1 // pred_check_branch
      %18 = sbr.rel (0) target = $region13
    $region12: #{tpu_custom_call.1} parent=1 // pred_region
      _
    $region13: #{tpu_custom_call.1} parent=1 // pred_fallthru
      _
    // Predicated region
    $region14: #{tpu_custom_call.1} parent=1 // pred_check
      _
    $region15: #{tpu_custom_call.1} parent=1 // pred_check_branch
      %20 = sbr.rel (0) target = $region17
    $region16: #{tpu_custom_call.1} parent=1 // pred_region
      _
    $region17: #{tpu_custom_call.1} parent=1 // pred_fallthru
      _
    // Predicated region
    $region18: #{tpu_custom_call.1} parent=1 // pred_check
      _
    $region19: #{tpu_custom_call.1} parent=1 // pred_check_branch
      %22 = sbr.rel (0) target = $region21
    $region20: #{tpu_custom_call.1} parent=1 // pred_region
      _
    $region21: #{tpu_custom_call.1} parent=1 // pred_fallthru
      _
    // Predicated region
    $region22: #{tpu_custom_call.1} parent=1 // pred_check
      _
    $region23: #{tpu_custom_call.1} parent=1 // pred_check_branch
      %24 = sbr.rel (0) target = $region25
    $region24: #{tpu_custom_call.1} parent=1 // pred_region
      _
    $region25: #{tpu_custom_call.1} parent=1 // pred_fallthru
      _
    // Predicated region
    $region26: #{tpu_custom_call.1} parent=1 // pred_check
      _
    $region27: #{tpu_custom_call.1} parent=1 // pred_check_branch
      %26 = sbr.rel (0) target = $region29
    $region28: #{tpu_custom_call.1} parent=1 // pred_region
      _
    $region29: #{tpu_custom_call.1} parent=1 // pred_fallthru
      _
    %v27 = vld [vmem:[%s0] sm:$0xff]
    %v28 = vld [vmem:[%s0 + $0x8] sm:$0xff]
    %v29 = vlaneseq
    %v30 = vand.u32 %v29, 127
    %v31 = vadd.s32 %v30, 128
    %v32 = vadd.s32 %v30, 256
    %v33 = vadd.s32 %v30, 384
    %v34 = vand.u32 %v30, 255
    %v35 = vand.u32 %v31, 255
    %v36 = vand.u32 %v32, 255
    %v37 = vand.u32 %v33, 255
    %v38 = vand.u32 %v30, 15
    %v39 = vand.u32 %v31, 15
    %v40 = vand.u32 %v32, 15
    %v41 = vand.u32 %v33, 15
    %v43 = vcombine.high %v28, %v28
    %44 = vrot.lane.b32.xlu0 %v43, 17
    %v45 = vpop.permute.xlu0 %44
    %v48 = vcombine.high %v27, %v27
    %49 = vrot.lane.b32.xlu0 %v27, 17
    %v50 = vpop.permute.xlu0 %49
    %51 = vrot.lane.b32.xlu0 %v48, 17
    %v52 = vpop.permute.xlu0 %51
    %53 = vrot.lane.b32.xlu0 %v28, 17
    %v54 = vpop.permute.xlu0 %53
    %vm55 = vcmask 138240
    %v56 = vsel %vm55, %v50, %v52
    %v57 = vsel %vm55, %v52, %v54
    %v58 = vsel %vm55, %v54, %v45
    %v63 = vsel %vm55, %v45, %v50
    %vm64 = vcmp.ge.s32.totalorder %v34, 16
    %vm65 = vcmp.ge.s32.totalorder %v35, 16
    %vm66 = vcmp.ge.s32.totalorder %v36, 16
    %vm67 = vcmp.ge.s32.totalorder %v37, 16
    %vm68 = vcmp.ge.s32.totalorder %v38, 1
    %vm69 = vcmp.ge.s32.totalorder %v39, 1
    %vm70 = vcmp.ge.s32.totalorder %v40, 1
    %vm71 = vcmp.ge.s32.totalorder %v41, 1
    %vm72 = vmand %vm64, %vm68
    %vm73 = vmand %vm65, %vm69
    %vm74 = vmand %vm66, %vm70
    %vm75 = vmand %vm67, %vm71
    %v76 = vsel %vm72, 1, 0
    %v77 = vsel %vm73, 1, 0
    %v78 = vsel %vm74, 1, 0
    %v79 = vsel %vm75, 1, 0
    %vm80 = vcmp.eq.s32.totalorder %v76, 1
    %vm81 = vcmp.eq.s32.totalorder %v77, 1
    %vm82 = vcmp.eq.s32.totalorder %v78, 1
    %vm83 = vcmp.eq.s32.totalorder %v79, 1
    %v84 = vsel %vm80, %v63, 0.0
    %v85 = vsel %vm81, %v56, 0.0
    %v86 = vsel %vm82, %v57, 0.0
    %v87 = vsel %vm83, %v58, 0.0
    %88 = vrot.lane.b32.xlu0 %v43, 16
    %v89 = vpop.permute.xlu0 %88
    %91 = vrot.lane.b32.xlu0 %v27, 16
    %v92 = vpop.permute.xlu0 %91
    %93 = vrot.lane.b32.xlu0 %v48, 16
    %v94 = vpop.permute.xlu0 %93
    %95 = vrot.lane.b32.xlu0 %v28, 16
    %v96 = vpop.permute.xlu0 %95
    %vm97 = vcmask 130048
    %v98 = vsel %vm97, %v92, %v94
    %v99 = vsel %vm97, %v94, %v96
    %v100 = vsel %vm97, %v96, %v89
    %v105 = vsel %vm97, %v89, %v92
    %v106 = vsel %vm64, 1, 0
    %v107 = vsel %vm65, 1, 0
    %v108 = vsel %vm66, 1, 0
    %v109 = vsel %vm67, 1, 0
    %vm110 = vcmp.eq.s32.totalorder %v106, 1
    %vm111 = vcmp.eq.s32.totalorder %v107, 1
    %vm112 = vcmp.eq.s32.totalorder %v108, 1
    %vm113 = vcmp.eq.s32.totalorder %v109, 1
    %v114 = vsel %vm110, %v105, 0.0
    %v115 = vsel %vm111, %v98, 0.0
    %v116 = vsel %vm112, %v99, 0.0
    %v117 = vsel %vm113, %v100, 0.0
    %118 = vrot.lane.b32.xlu0 %v43, 15
    %v119 = vpop.permute.xlu0 %118
    %121 = vrot.lane.b32.xlu0 %v27, 15
    %v122 = vpop.permute.xlu0 %121
    %123 = vrot.lane.b32.xlu0 %v48, 15
    %v124 = vpop.permute.xlu0 %123
    %125 = vrot.lane.b32.xlu0 %v28, 15
    %v126 = vpop.permute.xlu0 %125
    %vm127 = vcmask 121856
    %v128 = vsel %vm127, %v122, %v124
    %v129 = vsel %vm127, %v124, %v126
    %v130 = vsel %vm127, %v126, %v119
    %v135 = vsel %vm127, %v119, %v122
    %vm136 = vcmp.lt.s32.totalorder %v38, 15
    %vm137 = vcmp.lt.s32.totalorder %v39, 15
    %vm138 = vcmp.lt.s32.totalorder %v40, 15
    %vm139 = vcmp.lt.s32.totalorder %v41, 15
    %vm140 = vmand %vm64, %vm136
    %vm141 = vmand %vm65, %vm137
    %vm142 = vmand %vm66, %vm138
    %vm143 = vmand %vm67, %vm139
    %v144 = vsel %vm140, 1, 0
    %v145 = vsel %vm141, 1, 0
    %v146 = vsel %vm142, 1, 0
    %v147 = vsel %vm143, 1, 0
    %vm148 = vcmp.eq.s32.totalorder %v144, 1
    %vm149 = vcmp.eq.s32.totalorder %v145, 1
    %vm150 = vcmp.eq.s32.totalorder %v146, 1
    %vm151 = vcmp.eq.s32.totalorder %v147, 1
    %v152 = vsel %vm148, %v135, 0.0
    %v153 = vsel %vm149, %v128, 0.0
    %v154 = vsel %vm150, %v129, 0.0
    %v155 = vsel %vm151, %v130, 0.0
    %156 = vrot.lane.b32.xlu0 %v43, 1
    %v157 = vpop.permute.xlu0 %156
    %159 = vrot.lane.b32.xlu0 %v27, 1
    %v160 = vpop.permute.xlu0 %159
    %161 = vrot.lane.b32.xlu0 %v48, 1
    %v162 = vpop.permute.xlu0 %161
    %163 = vrot.lane.b32.xlu0 %v28, 1
    %v164 = vpop.permute.xlu0 %163
    %vm165 = vcmask 7168
    %v166 = vsel %vm165, %v160, %v162
    %v167 = vsel %vm165, %v162, %v164
    %v168 = vsel %vm165, %v164, %v157
    %v173 = vsel %vm165, %v157, %v160
    %v174 = vsel %vm68, 1, 0
    %v175 = vsel %vm69, 1, 0
    %v176 = vsel %vm70, 1, 0
    %v177 = vsel %vm71, 1, 0
    %vm178 = vcmp.eq.s32.totalorder %v174, 1
    %vm179 = vcmp.eq.s32.totalorder %v175, 1
    %vm180 = vcmp.eq.s32.totalorder %v176, 1
    %vm181 = vcmp.eq.s32.totalorder %v177, 1
    %v182 = vsel %vm178, %v173, 0.0
    %v183 = vsel %vm179, %v166, 0.0
    %v184 = vsel %vm180, %v167, 0.0
    %v185 = vsel %vm181, %v168, 0.0
    %186 = vrot.lane.b32.xlu0 %v27, 127
    %v187 = vpop.permute.xlu0 %186
    %188 = vrot.lane.b32.xlu0 %v48, 127
    %v189 = vpop.permute.xlu0 %188
    %190 = vrot.lane.b32.xlu0 %v28, 127
    %v191 = vpop.permute.xlu0 %190
    %192 = vrot.lane.b32.xlu0 %v43, 127
    %v193 = vpop.permute.xlu0 %192
    %vm194 = vcmask 1039360
    %v195 = vsel %vm194, %v187, %v189
    %v196 = vsel %vm194, %v189, %v191
    %v197 = vsel %vm194, %v191, %v193
    %v203 = vsel %vm194, %v193, %v187
    %v204 = vsel %vm136, 1, 0
    %v205 = vsel %vm137, 1, 0
    %v206 = vsel %vm138, 1, 0
    %v207 = vsel %vm139, 1, 0
    %vm208 = vcmp.eq.s32.totalorder %v204, 1
    %vm209 = vcmp.eq.s32.totalorder %v205, 1
    %vm210 = vcmp.eq.s32.totalorder %v206, 1
    %vm211 = vcmp.eq.s32.totalorder %v207, 1
    %v212 = vsel %vm208, %v195, 0.0
    %v213 = vsel %vm209, %v196, 0.0
    %v214 = vsel %vm210, %v197, 0.0
    %v215 = vsel %vm211, %v203, 0.0
    %216 = vrot.lane.b32.xlu0 %v27, 113
    %v217 = vpop.permute.xlu0 %216
    %218 = vrot.lane.b32.xlu0 %v48, 113
    %v219 = vpop.permute.xlu0 %218
    %220 = vrot.lane.b32.xlu0 %v28, 113
    %v221 = vpop.permute.xlu0 %220
    %222 = vrot.lane.b32.xlu0 %v43, 113
    %v223 = vpop.permute.xlu0 %222
    %vm224 = vcmask 924672
    %v225 = vsel %vm224, %v217, %v219
    %v226 = vsel %vm224, %v219, %v221
    %v227 = vsel %vm224, %v221, %v223
    %v233 = vsel %vm224, %v223, %v217
    %vm234 = vcmp.lt.s32.totalorder %v34, 240
    %vm235 = vcmp.lt.s32.totalorder %v35, 240
    %vm236 = vcmp.lt.s32.totalorder %v36, 240
    %vm237 = vcmp.lt.s32.totalorder %v37, 240
    %vm238 = vmand %vm234, %vm68
    %vm239 = vmand %vm235, %vm69
    %vm240 = vmand %vm236, %vm70
    %vm241 = vmand %vm237, %vm71
    %v242 = vsel %vm238, 1, 0
    %v243 = vsel %vm239, 1, 0
    %v244 = vsel %vm240, 1, 0
    %v245 = vsel %vm241, 1, 0
    %vm246 = vcmp.eq.s32.totalorder %v242, 1
    %vm247 = vcmp.eq.s32.totalorder %v243, 1
    %vm248 = vcmp.eq.s32.totalorder %v244, 1
    %vm249 = vcmp.eq.s32.totalorder %v245, 1
    %v250 = vsel %vm246, %v225, 0.0
    %v251 = vsel %vm247, %v226, 0.0
    %v252 = vsel %vm248, %v227, 0.0
    %v253 = vsel %vm249, %v233, 0.0
    %254 = vrot.lane.b32.xlu0 %v27, 112
    %v255 = vpop.permute.xlu0 %254
    %256 = vrot.lane.b32.xlu0 %v48, 112
    %v257 = vpop.permute.xlu0 %256
    %258 = vrot.lane.b32.xlu0 %v28, 112
    %v259 = vpop.permute.xlu0 %258
    %260 = vrot.lane.b32.xlu0 %v43, 112
    %v261 = vpop.permute.xlu0 %260
    %vm262 = vcmask 916480
    %v263 = vsel %vm262, %v255, %v257
    %v264 = vsel %vm262, %v257, %v259
    %v265 = vsel %vm262, %v259, %v261
    %v271 = vsel %vm262, %v261, %v255
    %v272 = vsel %vm234, 1, 0
    %v273 = vsel %vm235, 1, 0
    %v274 = vsel %vm236, 1, 0
    %v275 = vsel %vm237, 1, 0
    %vm276 = vcmp.eq.s32.totalorder %v272, 1
    %vm277 = vcmp.eq.s32.totalorder %v273, 1
    %vm278 = vcmp.eq.s32.totalorder %v274, 1
    %vm279 = vcmp.eq.s32.totalorder %v275, 1
    %v280 = vsel %vm276, %v263, 0.0
    %v281 = vsel %vm277, %v264, 0.0
    %v282 = vsel %vm278, %v265, 0.0
    %v283 = vsel %vm279, %v271, 0.0
    %284 = vrot.lane.b32.xlu0 %v27, 111
    %v285 = vpop.permute.xlu0 %284
    %286 = vrot.lane.b32.xlu0 %v48, 111
    %v287 = vpop.permute.xlu0 %286
    %288 = vrot.lane.b32.xlu0 %v28, 111
    %v289 = vpop.permute.xlu0 %288
    %290 = vrot.lane.b32.xlu0 %v43, 111
    %v291 = vpop.permute.xlu0 %290
    %vm292 = vcmask 908288
    %v293 = vsel %vm292, %v285, %v287
    %v294 = vsel %vm292, %v287, %v289
    %v295 = vsel %vm292, %v289, %v291
    %v301 = vsel %vm292, %v291, %v285
    %vm302 = vmand %vm234, %vm136
    %vm303 = vmand %vm235, %vm137
    %vm304 = vmand %vm236, %vm138
    %vm305 = vmand %vm237, %vm139
    %v306 = vsel %vm302, 1, 0
    %v307 = vsel %vm303, 1, 0
    %v308 = vsel %vm304, 1, 0
    %v309 = vsel %vm305, 1, 0
    %vm310 = vcmp.eq.s32.totalorder %v306, 1
    %vm311 = vcmp.eq.s32.totalorder %v307, 1
    %vm312 = vcmp.eq.s32.totalorder %v308, 1
    %vm313 = vcmp.eq.s32.totalorder %v309, 1
    %v314 = vsel %vm310, %v293, 0.0
    %v315 = vsel %vm311, %v294, 0.0
    %v316 = vsel %vm312, %v295, 0.0
    %v317 = vsel %vm313, %v301, 0.0
    %v322 = vrot.slane %v114, 4
    %v323 = vrot.slane %v115, 4
    %v324 = vrot.slane %v116, 4
    %v325 = vrot.slane %v117, 4
    %v334 = vrot.slane %v182, 4
    %v335 = vrot.slane %v183, 4
    %v336 = vrot.slane %v184, 4
    %v337 = vrot.slane %v185, 4
    %v348 = vrot.slane %v212, 4
    %v349 = vrot.slane %v213, 4
    %v350 = vrot.slane %v214, 4
    %v351 = vrot.slane %v215, 4
    %v360 = vrot.slane %v280, 4
    %v361 = vrot.slane %v281, 4
    %v362 = vrot.slane %v282, 4
    %v363 = vrot.slane %v283, 4
    %vm368 = vcmask 1043456
    %v369 = vsel %vm368, %v84, %v322
    %v370 = vsel %vm368, %v85, %v323
    %v371 = vsel %vm368, %v86, %v324
    %v372 = vsel %vm368, %v87, %v325
    %v373 = vsel %vm368, %v152, %v334
    %v374 = vsel %vm368, %v153, %v335
    %v375 = vsel %vm368, %v154, %v336
    %v376 = vsel %vm368, %v155, %v337
    %v377 = vsel %vm368, %v27, %v348
    %v378 = vsel %vm368, %v48, %v349
    %v379 = vsel %vm368, %v28, %v350
    %v380 = vsel %vm368, %v43, %v351
    %v381 = vsel %vm368, %v250, %v360
    %v382 = vsel %vm368, %v251, %v361
    %v383 = vsel %vm368, %v252, %v362
    %v384 = vsel %vm368, %v253, %v363
    %v385 = vld [vmem:[%s1] sm:$0xff]
    %v386 = vld [vmem:[%s2] sm:$0xff]
    %388 = vset.pattern.permute.xlu0 0
    %389 = vperm.xlu0 %388, %v386
    %v390 = vpop.permute.xlu0 %389
    %vm392 = vcmask 293888
    %v394 = vsel %vm392, %v385, 0
    %v397 = vsel %vm368, %v314, 0
    %v400 = vsel %vm368, %v315, 0
    %v403 = vsel %vm368, %v316, 0
    %v406 = vsel %vm368, %v317, 0
    %408 = vmatprep.subr.mxu0 %v370
    %409 = vmatpush1.msra.mxu0 %v369
    %410 = vmatprep.subr.mxu0 %v374
    %411 = vmatpush1.msra.mxu0 %v373
    %412 = vmatprep.subr.mxu0 %v378
    %413 = vmatpush1.msra.mxu0 %v377
    %414 = vmatprep.subr.mxu0 %v382
    %415 = vmatpush1.msra.mxu0 %v381
    %416 = vmatprep.subr.mxu0 %v400
    %417 = vmatpush1.msra.mxu0 %v397
    %418 = vmatprep.subr.mxu0 0.0
    %419 = vmatpush1.msra.mxu0 0.0
    %420 = vmatprep.subr.mxu0 0.0
    %421 = vmatpush1.msra.mxu0 0.0
    %422 = vmatprep.subr.mxu0 0.0
    %423 = vmatpush1.msra.mxu0 0.0
    %424 = vmatprep.subr.mxu0 0.0
    %425 = vmatpush1.msra.mxu0 0.0
    %426 = vmatprep.subr.mxu0 0.0
    %427 = vmatpush1.msra.mxu0 0.0
    %428 = vmatprep.subr.mxu0 0.0
    %429 = vmatpush1.msra.mxu0 0.0
    %430 = vmatprep.subr.mxu0 0.0
    %431 = vmatpush1.msra.mxu0 0.0
    %432 = vmatprep.subr.mxu0 0.0
    %433 = vmatpush1.msra.mxu0 0.0
    %434 = vmatprep.subr.mxu0 0.0
    %435 = vmatpush1.msra.mxu0 0.0
    %436 = vmatprep.subr.mxu0 0.0
    %437 = vmatpush1.msra.mxu0 0.0
    %438 = vmatprep.subr.mxu0 0.0
    %439 = vmatpush1.msra.mxu0 0.0
    %440 = vmatprep.subr.mxu0 0.0
    %441 = vmatpush1.msra.mxu0 0.0
    %442 = vmatprep.subr.mxu0 0.0
    %443 = vmatpush1.msra.mxu0 0.0
    %444 = vmatprep.subr.mxu0 0.0
    %445 = vmatpush1.msra.mxu0 0.0
    %446 = vmatprep.subr.mxu0 0.0
    %447 = vmatpush1.msra.mxu0 0.0
    %448 = vmatprep.subr.mxu0 0.0
    %449 = vmatpush1.msra.mxu0 0.0
    %450 = vmatprep.subr.mxu0 0.0
    %451 = vmatpush1.msra.mxu0 0.0
    %452 = vmatprep.subr.mxu0 0.0
    %453 = vmatpush1.msra.mxu0 0.0
    %454 = vmatprep.subr.mxu0 0.0
    %455 = vmatpush1.msra.mxu0 0.0
    %456 = vmatprep.subr.mxu0 0.0
    %457 = vmatpush1.msra.mxu0 0.0
    %458 = vmatprep.subr.mxu0 0.0
    %459 = vmatpush1.msra.mxu0 0.0
    %460 = vmatprep.subr.mxu0 0.0
    %461 = vmatpush1.msra.mxu0 0.0
    %462 = vmatprep.subr.mxu0 0.0
    %463 = vmatpush1.msra.mxu0 0.0
    %464 = vmatprep.subr.mxu0 0.0
    %465 = vmatpush1.msra.mxu0 0.0
    %466 = vmatprep.subr.mxu0 0.0
    %467 = vmatpush1.msra.mxu0 0.0
    %468 = vmatprep.subr.mxu0 0.0
    %469 = vmatpush1.msra.mxu0 0.0
    %470 = vmatprep.subr.mxu0 0.0
    %471 = vmatpush1.msra.mxu0 0.0
    %472 = vmatprep.mubr.f32.mxu0 0.0
    %473 = vmatmul.mubr.f32.gmra.mrb[0].mxu0 %v394
    %v474 = vpop.f32.mrb[0].mxu0
    %v475 = vadd.f32 %v390, %v474
    %v476 = vpop.f32.mrb[0].mxu0
    %v477 = vadd.f32 %v390, %v476
    %478 = vdwg.mxu0
    %479 = vmatprep.subr.mxu0 %v372
    %480 = vmatpush1.msra.mxu0 %v371
    %481 = vmatprep.subr.mxu0 %v376
    %482 = vmatpush1.msra.mxu0 %v375
    %483 = vmatprep.subr.mxu0 %v380
    %484 = vmatpush1.msra.mxu0 %v379
    %485 = vmatprep.subr.mxu0 %v384
    %486 = vmatpush1.msra.mxu0 %v383
    %487 = vmatprep.subr.mxu0 %v406
    %488 = vmatpush1.msra.mxu0 %v403
    %489 = vmatprep.subr.mxu0 0.0
    %490 = vmatpush1.msra.mxu0 0.0
    %491 = vmatprep.subr.mxu0 0.0
    %492 = vmatpush1.msra.mxu0 0.0
    %493 = vmatprep.subr.mxu0 0.0
    %494 = vmatpush1.msra.mxu0 0.0
    %495 = vmatprep.subr.mxu0 0.0
    %496 = vmatpush1.msra.mxu0 0.0
    %497 = vmatprep.subr.mxu0 0.0
    %498 = vmatpush1.msra.mxu0 0.0
    %499 = vmatprep.subr.mxu0 0.0
    %500 = vmatpush1.msra.mxu0 0.0
    %501 = vmatprep.subr.mxu0 0.0
    %502 = vmatpush1.msra.mxu0 0.0
    %503 = vmatprep.subr.mxu0 0.0
    %504 = vmatpush1.msra.mxu0 0.0
    %505 = vmatprep.subr.mxu0 0.0
    %506 = vmatpush1.msra.mxu0 0.0
    %507 = vmatprep.subr.mxu0 0.0
    %508 = vmatpush1.msra.mxu0 0.0
    %509 = vmatprep.subr.mxu0 0.0
    %510 = vmatpush1.msra.mxu0 0.0
    %511 = vmatprep.subr.mxu0 0.0
    %512 = vmatpush1.msra.mxu0 0.0
    %513 = vmatprep.subr.mxu0 0.0
    %514 = vmatpush1.msra.mxu0 0.0
    %515 = vmatprep.subr.mxu0 0.0
    %516 = vmatpush1.msra.mxu0 0.0
    %517 = vmatprep.subr.mxu0 0.0
    %518 = vmatpush1.msra.mxu0 0.0
    %519 = vmatprep.subr.mxu0 0.0
    %520 = vmatpush1.msra.mxu0 0.0
    %521 = vmatprep.subr.mxu0 0.0
    %522 = vmatpush1.msra.mxu0 0.0
    %523 = vmatprep.subr.mxu0 0.0
    %524 = vmatpush1.msra.mxu0 0.0
    %525 = vmatprep.subr.mxu0 0.0
    %526 = vmatpush1.msra.mxu0 0.0
    %527 = vmatprep.subr.mxu0 0.0
    %528 = vmatpush1.msra.mxu0 0.0
    %529 = vmatprep.subr.mxu0 0.0
    %530 = vmatpush1.msra.mxu0 0.0
    %531 = vmatprep.subr.mxu0 0.0
    %532 = vmatpush1.msra.mxu0 0.0
    %533 = vmatprep.subr.mxu0 0.0
    %534 = vmatpush1.msra.mxu0 0.0
    %535 = vmatprep.subr.mxu0 0.0
    %536 = vmatpush1.msra.mxu0 0.0
    %537 = vmatprep.subr.mxu0 0.0
    %538 = vmatpush1.msra.mxu0 0.0
    %539 = vmatprep.subr.mxu0 0.0
    %540 = vmatpush1.msra.mxu0 0.0
    %541 = vmatprep.subr.mxu0 0.0
    %542 = vmatpush1.msra.mxu0 0.0
    %543 = vmatprep.mubr.f32.mxu0 0.0
    %544 = vmatmul.mubr.f32.gmra.mrb[0].mxu0 %v394
    %v545 = vpop.f32.mrb[0].mxu0
    %v546 = vadd.f32 %v390, %v545
    %v547 = vpop.f32.mrb[0].mxu0
    %v548 = vadd.f32 %v390, %v547
    %549 = vdwg.mxu0
    %v550 = vmax.f32 %v475, 0.0
    %v551 = vmax.f32 %v477, 0.0
    %v552 = vmax.f32 %v546, 0.0
    %v553 = vmax.f32 %v548, 0.0
    %v556 = vcombine.low %v550, %v551
    %v558 = vunpack.c.l.s4 1966171168
    %v559 = vunpack.c.0.s8 %v558
    %v560 = vlaneseq
    %v561 = vshrl.u32 %v560, 7
    %v562 = vsub.s32 %v559, %v561
    %v563 = vrot.slane %v556, %v562
    %v565 = vunpack.c.l.s4 1966171168
    %v566 = vunpack.c.0.s8 %v565
    %v567 = vlaneseq
    %v568 = vshrl.u32 %v567, 7
    %v569 = vsub.s32 %v566, %v568
    %v570 = vrot.slane %v563, %v569
    %v572 = vlaneseq
    %vm573 = vcmp.ge.s32.totalorder %v572, 0
    %vm574 = vcmp.lt.s32.totalorder %v572, 256
    %vm575 = vmand %vm573, %vm574
    %576 = vst.msk [vmem:[#allocation2] ss:$2 sm:$0x3] %vm575, %v570
    %v579 = vcombine.low %v552, %v553
    %v581 = vunpack.c.l.s4 1966171168
    %v582 = vunpack.c.0.s8 %v581
    %v583 = vlaneseq
    %v584 = vshrl.u32 %v583, 7
    %v585 = vsub.s32 %v582, %v584
    %v586 = vrot.slane %v579, %v585
    %v588 = vunpack.c.l.s4 1966171168
    %v589 = vunpack.c.0.s8 %v588
    %v590 = vlaneseq
    %v591 = vshrl.u32 %v590, 7
    %v592 = vsub.s32 %v589, %v591
    %v593 = vrot.slane %v586, %v592
    %s595 = scalar_lea.vmem [#allocation2], 1
    %596 = vst.msk [vmem:[%s595] ss:$2 sm:$0x3] %vm575, %v593
    %v597 = vcombine.high %v563, %v563
    %v599 = vunpack.c.l.s4 1966171168
    %v600 = vunpack.c.0.s8 %v599
    %v601 = vlaneseq
    %v602 = vshrl.u32 %v601, 7
    %v603 = vsub.s32 %v600, %v602
    %v604 = vrot.slane %v597, %v603
    %s606 = scalar_lea.vmem [#allocation2], 4
    %607 = vst.msk [vmem:[%s606] ss:$2 sm:$0x3] %vm575, %v604
    %v608 = vcombine.high %v586, %v586
    %v610 = vunpack.c.l.s4 1966171168
    %v611 = vunpack.c.0.s8 %v610
    %v612 = vlaneseq
    %v613 = vshrl.u32 %v612, 7
    %v614 = vsub.s32 %v611, %v613
    %v615 = vrot.slane %v608, %v614
    %s617 = scalar_lea.vmem [#allocation2], 5
    %618 = vst.msk [vmem:[%s617] ss:$2 sm:$0x3] %vm575, %v615
    %v619 = vcombine.high %v570, %v570
    %s621 = scalar_lea.vmem [#allocation2], 8
    %622 = vst.msk [vmem:[%s621] ss:$2 sm:$0x3] %vm575, %v619
    %v623 = vcombine.high %v593, %v593
    %s625 = scalar_lea.vmem [#allocation2], 9
    %626 = vst.msk [vmem:[%s625] ss:$2 sm:$0x3] %vm575, %v623
    %v627 = vcombine.high %v604, %v604
    %s629 = scalar_lea.vmem [#allocation2], 12
    %630 = vst.msk [vmem:[%s629] ss:$2 sm:$0x3] %vm575, %v627
    %v631 = vcombine.high %v615, %v615
    %s633 = scalar_lea.vmem [#allocation2], 13
    %634 = vst.msk [vmem:[%s633] ss:$2 sm:$0x3] %vm575, %v631
    %v635 = vcombine.high %v550, %v551
    %v637 = vunpack.c.l.s4 1966171168
    %v638 = vunpack.c.0.s8 %v637
    %v639 = vlaneseq
    %v640 = vshrl.u32 %v639, 7
    %v641 = vsub.s32 %v638, %v640
    %v642 = vrot.slane %v635, %v641
    %v644 = vunpack.c.l.s4 1966171168
    %v645 = vunpack.c.0.s8 %v644
    %v646 = vlaneseq
    %v647 = vshrl.u32 %v646, 7
    %v648 = vsub.s32 %v645, %v647
    %v649 = vrot.slane %v642, %v648
    %s651 = scalar_lea.vmem [#allocation2], 16
    %652 = vst.msk [vmem:[%s651] ss:$2 sm:$0x3] %vm575, %v649
    %v653 = vcombine.high %v552, %v553
    %v655 = vunpack.c.l.s4 1966171168
    %v656 = vunpack.c.0.s8 %v655
    %v657 = vlaneseq
    %v658 = vshrl.u32 %v657, 7
    %v659 = vsub.s32 %v656, %v658
    %v660 = vrot.slane %v653, %v659
    %v662 = vunpack.c.l.s4 1966171168
    %v663 = vunpack.c.0.s8 %v662
    %v664 = vlaneseq
    %v665 = vshrl.u32 %v664, 7
    %v666 = vsub.s32 %v663, %v665
    %v667 = vrot.slane %v660, %v666
    %s669 = scalar_lea.vmem [#allocation2], 17
    %670 = vst.msk [vmem:[%s669] ss:$2 sm:$0x3] %vm575, %v667
    %v671 = vcombine.high %v642, %v642
    %v673 = vunpack.c.l.s4 1966171168
    %v674 = vunpack.c.0.s8 %v673
    %v675 = vlaneseq
    %v676 = vshrl.u32 %v675, 7
    %v677 = vsub.s32 %v674, %v676
    %v678 = vrot.slane %v671, %v677
    %s680 = scalar_lea.vmem [#allocation2], 20
    %681 = vst.msk [vmem:[%s680] ss:$2 sm:$0x3] %vm575, %v678
    %v682 = vcombine.high %v660, %v660
    %v684 = vunpack.c.l.s4 1966171168
    %v685 = vunpack.c.0.s8 %v684
    %v686 = vlaneseq
    %v687 = vshrl.u32 %v686, 7
    %v688 = vsub.s32 %v685, %v687
    %v689 = vrot.slane %v682, %v688
    %s691 = scalar_lea.vmem [#allocation2], 21
    %692 = vst.msk [vmem:[%s691] ss:$2 sm:$0x3] %vm575, %v689
    %v693 = vcombine.high %v649, %v649
    %s695 = scalar_lea.vmem [#allocation2], 24
    %696 = vst.msk [vmem:[%s695] ss:$2 sm:$0x3] %vm575, %v693
    %v697 = vcombine.high %v667, %v667
    %s699 = scalar_lea.vmem [#allocation2], 25
    %700 = vst.msk [vmem:[%s699] ss:$2 sm:$0x3] %vm575, %v697
    %v701 = vcombine.high %v678, %v678
    %s703 = scalar_lea.vmem [#allocation2], 28
    %704 = vst.msk [vmem:[%s703] ss:$2 sm:$0x3] %vm575, %v701
    %v705 = vcombine.high %v689, %v689
    %s707 = scalar_lea.vmem [#allocation2], 29
    %708 = vst.msk [vmem:[%s707] ss:$2 sm:$0x3] %vm575, %v705
    %v709 = vld [vmem:[#allocation2] sm:$0xff]
    %v710 = vld [vmem:[#allocation2 + $0x8] sm:$0xff]
    %v711 = vld [vmem:[#allocation2 + $0x10] sm:$0xff]
    %v712 = vld [vmem:[#allocation2 + $0x18] sm:$0xff]
    %v713 = vld [vmem:[%s3] sm:$0xff]
    %v714 = vld [vmem:[%s3 + $0x8] sm:$0xff]
    %v715 = vld [vmem:[%s3 + $0x10] sm:$0xff]
    %v716 = vld [vmem:[%s3 + $0x18] sm:$0xff]
    %v717 = vld [vmem:[%s3 + $0x20] sm:$0xff]
    %v718 = vld [vmem:[%s3 + $0x28] sm:$0xff]
    %v719 = vld [vmem:[%s3 + $0x30] sm:$0xff]
    %v720 = vld [vmem:[%s3 + $0x38] sm:$0xff]
    %v721 = vld [vmem:[%s3 + $0x40] sm:$0xff]
    %v722 = vld [vmem:[%s3 + $0x48] sm:$0xff]
    %v723 = vld [vmem:[%s3 + $0x50] sm:$0xff]
    %v724 = vld [vmem:[%s3 + $0x58] sm:$0xff]
    %v725 = vld [vmem:[%s3 + $0x60] sm:$0xff]
    %v726 = vld [vmem:[%s3 + $0x68] sm:$0xff]
    %v727 = vld [vmem:[%s3 + $0x70] sm:$0xff]
    %v728 = vld [vmem:[%s3 + $0x78] sm:$0xff]
    %v729 = vld [vmem:[%s3 + $0x80] sm:$0xff]
    %v730 = vld [vmem:[%s3 + $0x88] sm:$0xff]
    %v731 = vld [vmem:[%s3 + $0x90] sm:$0xff]
    %v732 = vld [vmem:[%s3 + $0x98] sm:$0xff]
    %v733 = vld [vmem:[%s3 + $0xa0] sm:$0xff]
    %v734 = vld [vmem:[%s3 + $0xa8] sm:$0xff]
    %v735 = vld [vmem:[%s3 + $0xb0] sm:$0xff]
    %v736 = vld [vmem:[%s3 + $0xb8] sm:$0xff]
    %v737 = vld [vmem:[%s3 + $0xc0] sm:$0xff]
    %v738 = vld [vmem:[%s3 + $0xc8] sm:$0xff]
    %v739 = vld [vmem:[%s3 + $0xd0] sm:$0xff]
    %v740 = vld [vmem:[%s3 + $0xd8] sm:$0xff]
    %v741 = vld [vmem:[%s3 + $0xe0] sm:$0xff]
    %v742 = vld [vmem:[%s3 + $0xe8] sm:$0xff]
    %v743 = vld [vmem:[%s3 + $0xf0] sm:$0xff]
    %v744 = vld [vmem:[%s3 + $0xf8] sm:$0xff]
    %v745 = vld [vmem:[%s3 + $0x100] sm:$0xff]
    %v746 = vld [vmem:[%s3 + $0x108] sm:$0xff]
    %v747 = vld [vmem:[%s3 + $0x110] sm:$0xff]
    %v748 = vld [vmem:[%s3 + $0x118] sm:$0xff]
    %v749 = vld [vmem:[%s3 + $0x120] sm:$0xff]
    %v750 = vld [vmem:[%s3 + $0x128] sm:$0xff]
    %v751 = vld [vmem:[%s3 + $0x130] sm:$0xff]
    %v752 = vld [vmem:[%s3 + $0x138] sm:$0xff]
    %v753 = vld [vmem:[%s3 + $0x140] sm:$0xff]
    %v754 = vld [vmem:[%s3 + $0x148] sm:$0xff]
    %v755 = vld [vmem:[%s3 + $0x150] sm:$0xff]
    %v756 = vld [vmem:[%s3 + $0x158] sm:$0xff]
    %v757 = vld [vmem:[%s3 + $0x160] sm:$0xff]
    %v758 = vld [vmem:[%s3 + $0x168] sm:$0xff]
    %v759 = vld [vmem:[%s3 + $0x170] sm:$0xff]
    %v760 = vld [vmem:[%s3 + $0x178] sm:$0xff]
    %v761 = vld [vmem:[%s3 + $0x180] sm:$0xff]
    %v762 = vld [vmem:[%s3 + $0x188] sm:$0xff]
    %v763 = vld [vmem:[%s3 + $0x190] sm:$0xff]
    %v764 = vld [vmem:[%s3 + $0x198] sm:$0xff]
    %v765 = vld [vmem:[%s3 + $0x1a0] sm:$0xff]
    %v766 = vld [vmem:[%s3 + $0x1a8] sm:$0xff]
    %v767 = vld [vmem:[%s3 + $0x1b0] sm:$0xff]
    %v768 = vld [vmem:[%s3 + $0x1b8] sm:$0xff]
    %v769 = vld [vmem:[%s3 + $0x1c0] sm:$0xff]
    %v770 = vld [vmem:[%s3 + $0x1c8] sm:$0xff]
    %v771 = vld [vmem:[%s3 + $0x1d0] sm:$0xff]
    %v772 = vld [vmem:[%s3 + $0x1d8] sm:$0xff]
    %v773 = vld [vmem:[%s3 + $0x1e0] sm:$0xff]
    %v774 = vld [vmem:[%s3 + $0x1e8] sm:$0xff]
    %v775 = vld [vmem:[%s3 + $0x1f0] sm:$0xff]
    %v776 = vld [vmem:[%s3 + $0x1f8] sm:$0xff]
    %v777 = vld [vmem:[%s3 + $0x200] sm:$0xff]
    %v778 = vld [vmem:[%s3 + $0x208] sm:$0xff]
    %v779 = vld [vmem:[%s3 + $0x210] sm:$0xff]
    %v780 = vld [vmem:[%s3 + $0x218] sm:$0xff]
    %v781 = vld [vmem:[%s3 + $0x220] sm:$0xff]
    %v782 = vld [vmem:[%s3 + $0x228] sm:$0xff]
    %v783 = vld [vmem:[%s3 + $0x230] sm:$0xff]
    %v784 = vld [vmem:[%s3 + $0x238] sm:$0xff]
    %v785 = vld [vmem:[%s3 + $0x240] sm:$0xff]
    %v786 = vld [vmem:[%s3 + $0x248] sm:$0xff]
    %v787 = vld [vmem:[%s3 + $0x250] sm:$0xff]
    %v788 = vld [vmem:[%s3 + $0x258] sm:$0xff]
    %v789 = vld [vmem:[%s3 + $0x260] sm:$0xff]
    %v790 = vld [vmem:[%s3 + $0x268] sm:$0xff]
    %v791 = vld [vmem:[%s3 + $0x270] sm:$0xff]
    %v792 = vld [vmem:[%s3 + $0x278] sm:$0xff]
    %v793 = vld [vmem:[%s3 + $0x280] sm:$0xff]
    %v794 = vld [vmem:[%s3 + $0x288] sm:$0xff]
    %v795 = vld [vmem:[%s3 + $0x290] sm:$0xff]
    %v796 = vld [vmem:[%s3 + $0x298] sm:$0xff]
    %v797 = vld [vmem:[%s3 + $0x2a0] sm:$0xff]
    %v798 = vld [vmem:[%s3 + $0x2a8] sm:$0xff]
    %v799 = vld [vmem:[%s3 + $0x2b0] sm:$0xff]
    %v800 = vld [vmem:[%s3 + $0x2b8] sm:$0xff]
    %v801 = vld [vmem:[%s3 + $0x2c0] sm:$0xff]
    %v802 = vld [vmem:[%s3 + $0x2c8] sm:$0xff]
    %v803 = vld [vmem:[%s3 + $0x2d0] sm:$0xff]
    %v804 = vld [vmem:[%s3 + $0x2d8] sm:$0xff]
    %v805 = vld [vmem:[%s3 + $0x2e0] sm:$0xff]
    %v806 = vld [vmem:[%s3 + $0x2e8] sm:$0xff]
    %v807 = vld [vmem:[%s3 + $0x2f0] sm:$0xff]
    %v808 = vld [vmem:[%s3 + $0x2f8] sm:$0xff]
    %v809 = vld [vmem:[%s3 + $0x300] sm:$0xff]
    %v810 = vld [vmem:[%s3 + $0x308] sm:$0xff]
    %v811 = vld [vmem:[%s3 + $0x310] sm:$0xff]
    %v812 = vld [vmem:[%s3 + $0x318] sm:$0xff]
    %v813 = vld [vmem:[%s3 + $0x320] sm:$0xff]
    %v814 = vld [vmem:[%s3 + $0x328] sm:$0xff]
    %v815 = vld [vmem:[%s3 + $0x330] sm:$0xff]
    %v816 = vld [vmem:[%s3 + $0x338] sm:$0xff]
    %v817 = vld [vmem:[%s3 + $0x340] sm:$0xff]
    %v818 = vld [vmem:[%s3 + $0x348] sm:$0xff]
    %v819 = vld [vmem:[%s3 + $0x350] sm:$0xff]
    %v820 = vld [vmem:[%s3 + $0x358] sm:$0xff]
    %v821 = vld [vmem:[%s3 + $0x360] sm:$0xff]
    %v822 = vld [vmem:[%s3 + $0x368] sm:$0xff]
    %v823 = vld [vmem:[%s3 + $0x370] sm:$0xff]
    %v824 = vld [vmem:[%s3 + $0x378] sm:$0xff]
    %v825 = vld [vmem:[%s3 + $0x380] sm:$0xff]
    %v826 = vld [vmem:[%s3 + $0x388] sm:$0xff]
    %v827 = vld [vmem:[%s3 + $0x390] sm:$0xff]
    %v828 = vld [vmem:[%s3 + $0x398] sm:$0xff]
    %v829 = vld [vmem:[%s3 + $0x3a0] sm:$0xff]
    %v830 = vld [vmem:[%s3 + $0x3a8] sm:$0xff]
    %v831 = vld [vmem:[%s3 + $0x3b0] sm:$0xff]
    %v832 = vld [vmem:[%s3 + $0x3b8] sm:$0xff]
    %v833 = vld [vmem:[%s3 + $0x3c0] sm:$0xff]
    %v834 = vld [vmem:[%s3 + $0x3c8] sm:$0xff]
    %v835 = vld [vmem:[%s3 + $0x3d0] sm:$0xff]
    %v836 = vld [vmem:[%s3 + $0x3d8] sm:$0xff]
    %v837 = vld [vmem:[%s3 + $0x3e0] sm:$0xff]
    %v838 = vld [vmem:[%s3 + $0x3e8] sm:$0xff]
    %v839 = vld [vmem:[%s3 + $0x3f0] sm:$0xff]
    %v840 = vld [vmem:[%s3 + $0x3f8] sm:$0xff]
    %v841 = vld [vmem:[%s3 + $0x400] sm:$0xff]
    %v842 = vld [vmem:[%s3 + $0x408] sm:$0xff]
    %v843 = vld [vmem:[%s3 + $0x410] sm:$0xff]
    %v844 = vld [vmem:[%s3 + $0x418] sm:$0xff]
    %v845 = vld [vmem:[%s3 + $0x420] sm:$0xff]
    %v846 = vld [vmem:[%s3 + $0x428] sm:$0xff]
    %v847 = vld [vmem:[%s3 + $0x430] sm:$0xff]
    %v848 = vld [vmem:[%s3 + $0x438] sm:$0xff]
    %v849 = vld [vmem:[%s3 + $0x440] sm:$0xff]
    %v850 = vld [vmem:[%s3 + $0x448] sm:$0xff]
    %v851 = vld [vmem:[%s3 + $0x450] sm:$0xff]
    %v852 = vld [vmem:[%s3 + $0x458] sm:$0xff]
    %v853 = vld [vmem:[%s3 + $0x460] sm:$0xff]
    %v854 = vld [vmem:[%s3 + $0x468] sm:$0xff]
    %v855 = vld [vmem:[%s3 + $0x470] sm:$0xff]
    %v856 = vld [vmem:[%s3 + $0x478] sm:$0xff]
    %v857 = vld [vmem:[%s3 + $0x480] sm:$0xff]
    %v858 = vld [vmem:[%s3 + $0x488] sm:$0xff]
    %v859 = vld [vmem:[%s3 + $0x490] sm:$0xff]
    %v860 = vld [vmem:[%s3 + $0x498] sm:$0xff]
    %v861 = vld [vmem:[%s3 + $0x4a0] sm:$0xff]
    %v862 = vld [vmem:[%s3 + $0x4a8] sm:$0xff]
    %v863 = vld [vmem:[%s3 + $0x4b0] sm:$0xff]
    %v864 = vld [vmem:[%s3 + $0x4b8] sm:$0xff]
    %v865 = vld [vmem:[%s3 + $0x4c0] sm:$0xff]
    %v866 = vld [vmem:[%s3 + $0x4c8] sm:$0xff]
    %v867 = vld [vmem:[%s3 + $0x4d0] sm:$0xff]
    %v868 = vld [vmem:[%s3 + $0x4d8] sm:$0xff]
    %v869 = vld [vmem:[%s3 + $0x4e0] sm:$0xff]
    %v870 = vld [vmem:[%s3 + $0x4e8] sm:$0xff]
    %v871 = vld [vmem:[%s3 + $0x4f0] sm:$0xff]
    %v872 = vld [vmem:[%s3 + $0x4f8] sm:$0xff]
    %v873 = vld [vmem:[%s3 + $0x500] sm:$0xff]
    %v874 = vld [vmem:[%s3 + $0x508] sm:$0xff]
    %v875 = vld [vmem:[%s3 + $0x510] sm:$0xff]
    %v876 = vld [vmem:[%s3 + $0x518] sm:$0xff]
    %v877 = vld [vmem:[%s3 + $0x520] sm:$0xff]
    %v878 = vld [vmem:[%s3 + $0x528] sm:$0xff]
    %v879 = vld [vmem:[%s3 + $0x530] sm:$0xff]
    %v880 = vld [vmem:[%s3 + $0x538] sm:$0xff]
    %v881 = vld [vmem:[%s3 + $0x540] sm:$0xff]
    %v882 = vld [vmem:[%s3 + $0x548] sm:$0xff]
    %v883 = vld [vmem:[%s3 + $0x550] sm:$0xff]
    %v884 = vld [vmem:[%s3 + $0x558] sm:$0xff]
    %v885 = vld [vmem:[%s3 + $0x560] sm:$0xff]
    %v886 = vld [vmem:[%s3 + $0x568] sm:$0xff]
    %v887 = vld [vmem:[%s3 + $0x570] sm:$0xff]
    %v888 = vld [vmem:[%s3 + $0x578] sm:$0xff]
    %v889 = vld [vmem:[%s3 + $0x580] sm:$0xff]
    %v890 = vld [vmem:[%s3 + $0x588] sm:$0xff]
    %v891 = vld [vmem:[%s3 + $0x590] sm:$0xff]
    %v892 = vld [vmem:[%s3 + $0x598] sm:$0xff]
    %v893 = vld [vmem:[%s3 + $0x5a0] sm:$0xff]
    %v894 = vld [vmem:[%s3 + $0x5a8] sm:$0xff]
    %v895 = vld [vmem:[%s3 + $0x5b0] sm:$0xff]
    %v896 = vld [vmem:[%s3 + $0x5b8] sm:$0xff]
    %v897 = vld [vmem:[%s3 + $0x5c0] sm:$0xff]
    %v898 = vld [vmem:[%s3 + $0x5c8] sm:$0xff]
    %v899 = vld [vmem:[%s3 + $0x5d0] sm:$0xff]
    %v900 = vld [vmem:[%s3 + $0x5d8] sm:$0xff]
    %v901 = vld [vmem:[%s3 + $0x5e0] sm:$0xff]
    %v902 = vld [vmem:[%s3 + $0x5e8] sm:$0xff]
    %v903 = vld [vmem:[%s3 + $0x5f0] sm:$0xff]
    %v904 = vld [vmem:[%s3 + $0x5f8] sm:$0xff]
    %v905 = vld [vmem:[%s3 + $0x600] sm:$0xff]
    %v906 = vld [vmem:[%s3 + $0x608] sm:$0xff]
    %v907 = vld [vmem:[%s3 + $0x610] sm:$0xff]
    %v908 = vld [vmem:[%s3 + $0x618] sm:$0xff]
    %v909 = vld [vmem:[%s3 + $0x620] sm:$0xff]
    %v910 = vld [vmem:[%s3 + $0x628] sm:$0xff]
    %v911 = vld [vmem:[%s3 + $0x630] sm:$0xff]
    %v912 = vld [vmem:[%s3 + $0x638] sm:$0xff]
    %v913 = vld [vmem:[%s3 + $0x640] sm:$0xff]
    %v914 = vld [vmem:[%s3 + $0x648] sm:$0xff]
    %v915 = vld [vmem:[%s3 + $0x650] sm:$0xff]
    %v916 = vld [vmem:[%s3 + $0x658] sm:$0xff]
    %v917 = vld [vmem:[%s3 + $0x660] sm:$0xff]
    %v918 = vld [vmem:[%s3 + $0x668] sm:$0xff]
    %v919 = vld [vmem:[%s3 + $0x670] sm:$0xff]
    %v920 = vld [vmem:[%s3 + $0x678] sm:$0xff]
    %v921 = vld [vmem:[%s3 + $0x680] sm:$0xff]
    %v922 = vld [vmem:[%s3 + $0x688] sm:$0xff]
    %v923 = vld [vmem:[%s3 + $0x690] sm:$0xff]
    %v924 = vld [vmem:[%s3 + $0x698] sm:$0xff]
    %v925 = vld [vmem:[%s3 + $0x6a0] sm:$0xff]
    %v926 = vld [vmem:[%s3 + $0x6a8] sm:$0xff]
    %v927 = vld [vmem:[%s3 + $0x6b0] sm:$0xff]
    %v928 = vld [vmem:[%s3 + $0x6b8] sm:$0xff]
    %v929 = vld [vmem:[%s3 + $0x6c0] sm:$0xff]
    %v930 = vld [vmem:[%s3 + $0x6c8] sm:$0xff]
    %v931 = vld [vmem:[%s3 + $0x6d0] sm:$0xff]
    %v932 = vld [vmem:[%s3 + $0x6d8] sm:$0xff]
    %v933 = vld [vmem:[%s3 + $0x6e0] sm:$0xff]
    %v934 = vld [vmem:[%s3 + $0x6e8] sm:$0xff]
    %v935 = vld [vmem:[%s3 + $0x6f0] sm:$0xff]
    %v936 = vld [vmem:[%s3 + $0x6f8] sm:$0xff]
    %v937 = vld [vmem:[%s3 + $0x700] sm:$0xff]
    %v938 = vld [vmem:[%s3 + $0x708] sm:$0xff]
    %v939 = vld [vmem:[%s3 + $0x710] sm:$0xff]
    %v940 = vld [vmem:[%s3 + $0x718] sm:$0xff]
    %v941 = vld [vmem:[%s3 + $0x720] sm:$0xff]
    %v942 = vld [vmem:[%s3 + $0x728] sm:$0xff]
    %v943 = vld [vmem:[%s3 + $0x730] sm:$0xff]
    %v944 = vld [vmem:[%s3 + $0x738] sm:$0xff]
    %v945 = vld [vmem:[%s3 + $0x740] sm:$0xff]
    %v946 = vld [vmem:[%s3 + $0x748] sm:$0xff]
    %v947 = vld [vmem:[%s3 + $0x750] sm:$0xff]
    %v948 = vld [vmem:[%s3 + $0x758] sm:$0xff]
    %v949 = vld [vmem:[%s3 + $0x760] sm:$0xff]
    %v950 = vld [vmem:[%s3 + $0x768] sm:$0xff]
    %v951 = vld [vmem:[%s3 + $0x770] sm:$0xff]
    %v952 = vld [vmem:[%s3 + $0x778] sm:$0xff]
    %v953 = vld [vmem:[%s3 + $0x780] sm:$0xff]
    %v954 = vld [vmem:[%s3 + $0x788] sm:$0xff]
    %v955 = vld [vmem:[%s3 + $0x790] sm:$0xff]
    %v956 = vld [vmem:[%s3 + $0x798] sm:$0xff]
    %v957 = vld [vmem:[%s3 + $0x7a0] sm:$0xff]
    %v958 = vld [vmem:[%s3 + $0x7a8] sm:$0xff]
    %v959 = vld [vmem:[%s3 + $0x7b0] sm:$0xff]
    %v960 = vld [vmem:[%s3 + $0x7b8] sm:$0xff]
    %v961 = vld [vmem:[%s3 + $0x7c0] sm:$0xff]
    %v962 = vld [vmem:[%s3 + $0x7c8] sm:$0xff]
    %v963 = vld [vmem:[%s3 + $0x7d0] sm:$0xff]
    %v964 = vld [vmem:[%s3 + $0x7d8] sm:$0xff]
    %v965 = vld [vmem:[%s3 + $0x7e0] sm:$0xff]
    %v966 = vld [vmem:[%s3 + $0x7e8] sm:$0xff]
    %v967 = vld [vmem:[%s3 + $0x7f0] sm:$0xff]
    %v968 = vld [vmem:[%s3 + $0x7f8] sm:$0xff]
    %v969 = vld [vmem:[%s4] sm:$0x1]
    %v971 = vlaneseq
    %v972 = vshrl.u32 %v971, 7
    %v973 = vsub.s32 0, %v972
    %v974 = vrot.slane %v969, %v973
    %v980 = vcombine.high %v709, %v709
    %v982 = vunpack.c.l.s4 1983009808
    %v983 = vunpack.c.0.s8 %v982
    %v984 = vlaneseq
    %v985 = vshrl.u32 %v984, 7
    %v986 = vsub.s32 %v983, %v985
    %v987 = vrot.slane %v709, %v986
    %v989 = vunpack.c.l.s4 1983009808
    %v990 = vunpack.c.0.s8 %v989
    %v991 = vlaneseq
    %v992 = vshrl.u32 %v991, 7
    %v993 = vsub.s32 %v990, %v992
    %v994 = vrot.slane %v980, %v993
    %v995 = vcombine.high %v987, %v987
    %v996 = vcombine.high %v994, %v994
    %v997 = vcombine.high %v710, %v710
    %v999 = vunpack.c.l.s4 1983009808
    %v1000 = vunpack.c.0.s8 %v999
    %v1001 = vlaneseq
    %v1002 = vshrl.u32 %v1001, 7
    %v1003 = vsub.s32 %v1000, %v1002
    %v1004 = vrot.slane %v710, %v1003
    %v1006 = vunpack.c.l.s4 1983009808
    %v1007 = vunpack.c.0.s8 %v1006
    %v1008 = vlaneseq
    %v1009 = vshrl.u32 %v1008, 7
    %v1010 = vsub.s32 %v1007, %v1009
    %v1011 = vrot.slane %v997, %v1010
    %v1012 = vcombine.high %v1004, %v1004
    %v1013 = vcombine.high %v1011, %v1011
    %v1014 = vcombine.high %v711, %v711
    %v1016 = vunpack.c.l.s4 1983009808
    %v1017 = vunpack.c.0.s8 %v1016
    %v1018 = vlaneseq
    %v1019 = vshrl.u32 %v1018, 7
    %v1020 = vsub.s32 %v1017, %v1019
    %v1021 = vrot.slane %v711, %v1020
    %v1023 = vunpack.c.l.s4 1983009808
    %v1024 = vunpack.c.0.s8 %v1023
    %v1025 = vlaneseq
    %v1026 = vshrl.u32 %v1025, 7
    %v1027 = vsub.s32 %v1024, %v1026
    %v1028 = vrot.slane %v1014, %v1027
    %v1029 = vcombine.high %v1021, %v1021
    %v1030 = vcombine.high %v1028, %v1028
    %v1031 = vcombine.high %v712, %v712
    %v1033 = vunpack.c.l.s4 1983009808
    %v1034 = vunpack.c.0.s8 %v1033
    %v1035 = vlaneseq
    %v1036 = vshrl.u32 %v1035, 7
    %v1037 = vsub.s32 %v1034, %v1036
    %v1038 = vrot.slane %v712, %v1037
    %v1040 = vunpack.c.l.s4 1983009808
    %v1041 = vunpack.c.0.s8 %v1040
    %v1042 = vlaneseq
    %v1043 = vshrl.u32 %v1042, 7
    %v1044 = vsub.s32 %v1041, %v1043
    %v1045 = vrot.slane %v1031, %v1044
    %v1046 = vcombine.high %v1038, %v1038
    %v1047 = vcombine.high %v1045, %v1045
    %1064 = vmatprep.subr.mxu0 0.0
    %1065 = vmatpush1.msra.mxu0 %v713
    %1066 = vmatprep.subr.mxu0 0.0
    %1067 = vmatpush1.msra.mxu0 %v714
    %1068 = vmatprep.subr.mxu0 0.0
    %1069 = vmatpush1.msra.mxu0 %v715
    %1070 = vmatprep.subr.mxu0 0.0
    %1071 = vmatpush1.msra.mxu0 %v716
    %1072 = vmatprep.subr.mxu0 0.0
    %1073 = vmatpush1.msra.mxu0 %v717
    %1074 = vmatprep.subr.mxu0 0.0
    %1075 = vmatpush1.msra.mxu0 %v718
    %1076 = vmatprep.subr.mxu0 0.0
    %1077 = vmatpush1.msra.mxu0 %v719
    %1078 = vmatprep.subr.mxu0 0.0
    %1079 = vmatpush1.msra.mxu0 %v720
    %1080 = vmatprep.subr.mxu0 0.0
    %1081 = vmatpush1.msra.mxu0 %v721
    %1082 = vmatprep.subr.mxu0 0.0
    %1083 = vmatpush1.msra.mxu0 %v722
    %1084 = vmatprep.subr.mxu0 0.0
    %1085 = vmatpush1.msra.mxu0 %v723
    %1086 = vmatprep.subr.mxu0 0.0
    %1087 = vmatpush1.msra.mxu0 %v724
    %1088 = vmatprep.subr.mxu0 0.0
    %1089 = vmatpush1.msra.mxu0 %v725
    %1090 = vmatprep.subr.mxu0 0.0
    %1091 = vmatpush1.msra.mxu0 %v726
    %1092 = vmatprep.subr.mxu0 0.0
    %1093 = vmatpush1.msra.mxu0 %v727
    %1094 = vmatprep.subr.mxu0 0.0
    %1095 = vmatpush1.msra.mxu0 %v728
    %1096 = vmatprep.subr.mxu0 0.0
    %1097 = vmatpush1.msra.mxu0 %v729
    %1098 = vmatprep.subr.mxu0 0.0
    %1099 = vmatpush1.msra.mxu0 %v730
    %1100 = vmatprep.subr.mxu0 0.0
    %1101 = vmatpush1.msra.mxu0 %v731
    %1102 = vmatprep.subr.mxu0 0.0
    %1103 = vmatpush1.msra.mxu0 %v732
    %1104 = vmatprep.subr.mxu0 0.0
    %1105 = vmatpush1.msra.mxu0 %v733
    %1106 = vmatprep.subr.mxu0 0.0
    %1107 = vmatpush1.msra.mxu0 %v734
    %1108 = vmatprep.subr.mxu0 0.0
    %1109 = vmatpush1.msra.mxu0 %v735
    %1110 = vmatprep.subr.mxu0 0.0
    %1111 = vmatpush1.msra.mxu0 %v736
    %1112 = vmatprep.subr.mxu0 0.0
    %1113 = vmatpush1.msra.mxu0 %v737
    %1114 = vmatprep.subr.mxu0 0.0
    %1115 = vmatpush1.msra.mxu0 %v738
    %1116 = vmatprep.subr.mxu0 0.0
    %1117 = vmatpush1.msra.mxu0 %v739
    %1118 = vmatprep.subr.mxu0 0.0
    %1119 = vmatpush1.msra.mxu0 %v740
    %1120 = vmatprep.subr.mxu0 0.0
    %1121 = vmatpush1.msra.mxu0 %v741
    %1122 = vmatprep.subr.mxu0 0.0
    %1123 = vmatpush1.msra.mxu0 %v742
    %1124 = vmatprep.subr.mxu0 0.0
    %1125 = vmatpush1.msra.mxu0 %v743
    %1126 = vmatprep.subr.mxu0 0.0
    %1127 = vmatpush1.msra.mxu0 %v744
    %1128 = vmatprep.mubr.f32.mxu0 %v995
    %1129 = vmatmul.mubr.f32.gmra.mrb[0].mxu0 %v987
    %v1130 = vpop.f32.mrb[0].mxu0
    %v1131 = vadd.f32 %v974, %v1130
    %v1132 = vpop.f32.mrb[0].mxu0
    %1133 = vdwg.mxu0
    %1134 = vmatprep.subr.mxu0 0.0
    %1135 = vmatpush1.msra.mxu0 %v745
    %1136 = vmatprep.subr.mxu0 0.0
    %1137 = vmatpush1.msra.mxu0 %v746
    %1138 = vmatprep.subr.mxu0 0.0
    %1139 = vmatpush1.msra.mxu0 %v747
    %1140 = vmatprep.subr.mxu0 0.0
    %1141 = vmatpush1.msra.mxu0 %v748
    %1142 = vmatprep.subr.mxu0 0.0
    %1143 = vmatpush1.msra.mxu0 %v749
    %1144 = vmatprep.subr.mxu0 0.0
    %1145 = vmatpush1.msra.mxu0 %v750
    %1146 = vmatprep.subr.mxu0 0.0
    %1147 = vmatpush1.msra.mxu0 %v751
    %1148 = vmatprep.subr.mxu0 0.0
    %1149 = vmatpush1.msra.mxu0 %v752
    %1150 = vmatprep.subr.mxu0 0.0
    %1151 = vmatpush1.msra.mxu0 %v753
    %1152 = vmatprep.subr.mxu0 0.0
    %1153 = vmatpush1.msra.mxu0 %v754
    %1154 = vmatprep.subr.mxu0 0.0
    %1155 = vmatpush1.msra.mxu0 %v755
    %1156 = vmatprep.subr.mxu0 0.0
    %1157 = vmatpush1.msra.mxu0 %v756
    %1158 = vmatprep.subr.mxu0 0.0
    %1159 = vmatpush1.msra.mxu0 %v757
    %1160 = vmatprep.subr.mxu0 0.0
    %1161 = vmatpush1.msra.mxu0 %v758
    %1162 = vmatprep.subr.mxu0 0.0
    %1163 = vmatpush1.msra.mxu0 %v759
    %1164 = vmatprep.subr.mxu0 0.0
    %1165 = vmatpush1.msra.mxu0 %v760
    %1166 = vmatprep.subr.mxu0 0.0
    %1167 = vmatpush1.msra.mxu0 %v761
    %1168 = vmatprep.subr.mxu0 0.0
    %1169 = vmatpush1.msra.mxu0 %v762
    %1170 = vmatprep.subr.mxu0 0.0
    %1171 = vmatpush1.msra.mxu0 %v763
    %1172 = vmatprep.subr.mxu0 0.0
    %1173 = vmatpush1.msra.mxu0 %v764
    %1174 = vmatprep.subr.mxu0 0.0
    %1175 = vmatpush1.msra.mxu0 %v765
    %1176 = vmatprep.subr.mxu0 0.0
    %1177 = vmatpush1.msra.mxu0 %v766
    %1178 = vmatprep.subr.mxu0 0.0
    %1179 = vmatpush1.msra.mxu0 %v767
    %1180 = vmatprep.subr.mxu0 0.0
    %1181 = vmatpush1.msra.mxu0 %v768
    %1182 = vmatprep.subr.mxu0 0.0
    %1183 = vmatpush1.msra.mxu0 %v769
    %1184 = vmatprep.subr.mxu0 0.0
    %1185 = vmatpush1.msra.mxu0 %v770
    %1186 = vmatprep.subr.mxu0 0.0
    %1187 = vmatpush1.msra.mxu0 %v771
    %1188 = vmatprep.subr.mxu0 0.0
    %1189 = vmatpush1.msra.mxu0 %v772
    %1190 = vmatprep.subr.mxu0 0.0
    %1191 = vmatpush1.msra.mxu0 %v773
    %1192 = vmatprep.subr.mxu0 0.0
    %1193 = vmatpush1.msra.mxu0 %v774
    %1194 = vmatprep.subr.mxu0 0.0
    %1195 = vmatpush1.msra.mxu0 %v775
    %1196 = vmatprep.subr.mxu0 0.0
    %1197 = vmatpush1.msra.mxu0 %v776
    %1198 = vmatprep.mubr.f32.mxu0 %v996
    %1199 = vmatmul.mubr.f32.gmra.mrb[0].mxu0 %v994
    %v1200 = vpop.f32.mrb[0].mxu0
    %v1201 = vadd.f32 %v1131, %v1200
    %v1202 = vpop.f32.mrb[0].mxu0
    %1203 = vdwg.mxu0
    %1204 = vmatprep.subr.mxu0 0.0
    %1205 = vmatpush1.msra.mxu0 %v777
    %1206 = vmatprep.subr.mxu0 0.0
    %1207 = vmatpush1.msra.mxu0 %v778
    %1208 = vmatprep.subr.mxu0 0.0
    %1209 = vmatpush1.msra.mxu0 %v779
    %1210 = vmatprep.subr.mxu0 0.0
    %1211 = vmatpush1.msra.mxu0 %v780
    %1212 = vmatprep.subr.mxu0 0.0
    %1213 = vmatpush1.msra.mxu0 %v781
    %1214 = vmatprep.subr.mxu0 0.0
    %1215 = vmatpush1.msra.mxu0 %v782
    %1216 = vmatprep.subr.mxu0 0.0
    %1217 = vmatpush1.msra.mxu0 %v783
    %1218 = vmatprep.subr.mxu0 0.0
    %1219 = vmatpush1.msra.mxu0 %v784
    %1220 = vmatprep.subr.mxu0 0.0
    %1221 = vmatpush1.msra.mxu0 %v785
    %1222 = vmatprep.subr.mxu0 0.0
    %1223 = vmatpush1.msra.mxu0 %v786
    %1224 = vmatprep.subr.mxu0 0.0
    %1225 = vmatpush1.msra.mxu0 %v787
    %1226 = vmatprep.subr.mxu0 0.0
    %1227 = vmatpush1.msra.mxu0 %v788
    %1228 = vmatprep.subr.mxu0 0.0
    %1229 = vmatpush1.msra.mxu0 %v789
    %1230 = vmatprep.subr.mxu0 0.0
    %1231 = vmatpush1.msra.mxu0 %v790
    %1232 = vmatprep.subr.mxu0 0.0
    %1233 = vmatpush1.msra.mxu0 %v791
    %1234 = vmatprep.subr.mxu0 0.0
    %1235 = vmatpush1.msra.mxu0 %v792
    %1236 = vmatprep.subr.mxu0 0.0
    %1237 = vmatpush1.msra.mxu0 %v793
    %1238 = vmatprep.subr.mxu0 0.0
    %1239 = vmatpush1.msra.mxu0 %v794
    %1240 = vmatprep.subr.mxu0 0.0
    %1241 = vmatpush1.msra.mxu0 %v795
    %1242 = vmatprep.subr.mxu0 0.0
    %1243 = vmatpush1.msra.mxu0 %v796
    %1244 = vmatprep.subr.mxu0 0.0
    %1245 = vmatpush1.msra.mxu0 %v797
    %1246 = vmatprep.subr.mxu0 0.0
    %1247 = vmatpush1.msra.mxu0 %v798
    %1248 = vmatprep.subr.mxu0 0.0
    %1249 = vmatpush1.msra.mxu0 %v799
    %1250 = vmatprep.subr.mxu0 0.0
    %1251 = vmatpush1.msra.mxu0 %v800
    %1252 = vmatprep.subr.mxu0 0.0
    %1253 = vmatpush1.msra.mxu0 %v801
    %1254 = vmatprep.subr.mxu0 0.0
    %1255 = vmatpush1.msra.mxu0 %v802
    %1256 = vmatprep.subr.mxu0 0.0
    %1257 = vmatpush1.msra.mxu0 %v803
    %1258 = vmatprep.subr.mxu0 0.0
    %1259 = vmatpush1.msra.mxu0 %v804
    %1260 = vmatprep.subr.mxu0 0.0
    %1261 = vmatpush1.msra.mxu0 %v805
    %1262 = vmatprep.subr.mxu0 0.0
    %1263 = vmatpush1.msra.mxu0 %v806
    %1264 = vmatprep.subr.mxu0 0.0
    %1265 = vmatpush1.msra.mxu0 %v807
    %1266 = vmatprep.subr.mxu0 0.0
    %1267 = vmatpush1.msra.mxu0 %v808
    %1268 = vmatprep.mubr.f32.mxu0 %v1012
    %1269 = vmatmul.mubr.f32.gmra.mrb[0].mxu0 %v1004
    %v1270 = vpop.f32.mrb[0].mxu0
    %v1271 = vadd.f32 %v1201, %v1270
    %v1272 = vpop.f32.mrb[0].mxu0
    %1273 = vdwg.mxu0
    %1274 = vmatprep.subr.mxu0 0.0
    %1275 = vmatpush1.msra.mxu0 %v809
    %1276 = vmatprep.subr.mxu0 0.0
    %1277 = vmatpush1.msra.mxu0 %v810
    %1278 = vmatprep.subr.mxu0 0.0
    %1279 = vmatpush1.msra.mxu0 %v811
    %1280 = vmatprep.subr.mxu0 0.0
    %1281 = vmatpush1.msra.mxu0 %v812
    %1282 = vmatprep.subr.mxu0 0.0
    %1283 = vmatpush1.msra.mxu0 %v813
    %1284 = vmatprep.subr.mxu0 0.0
    %1285 = vmatpush1.msra.mxu0 %v814
    %1286 = vmatprep.subr.mxu0 0.0
    %1287 = vmatpush1.msra.mxu0 %v815
    %1288 = vmatprep.subr.mxu0 0.0
    %1289 = vmatpush1.msra.mxu0 %v816
    %1290 = vmatprep.subr.mxu0 0.0
    %1291 = vmatpush1.msra.mxu0 %v817
    %1292 = vmatprep.subr.mxu0 0.0
    %1293 = vmatpush1.msra.mxu0 %v818
    %1294 = vmatprep.subr.mxu0 0.0
    %1295 = vmatpush1.msra.mxu0 %v819
    %1296 = vmatprep.subr.mxu0 0.0
    %1297 = vmatpush1.msra.mxu0 %v820
    %1298 = vmatprep.subr.mxu0 0.0
    %1299 = vmatpush1.msra.mxu0 %v821
    %1300 = vmatprep.subr.mxu0 0.0
    %1301 = vmatpush1.msra.mxu0 %v822
    %1302 = vmatprep.subr.mxu0 0.0
    %1303 = vmatpush1.msra.mxu0 %v823
    %1304 = vmatprep.subr.mxu0 0.0
    %1305 = vmatpush1.msra.mxu0 %v824
    %1306 = vmatprep.subr.mxu0 0.0
    %1307 = vmatpush1.msra.mxu0 %v825
    %1308 = vmatprep.subr.mxu0 0.0
    %1309 = vmatpush1.msra.mxu0 %v826
    %1310 = vmatprep.subr.mxu0 0.0
    %1311 = vmatpush1.msra.mxu0 %v827
    %1312 = vmatprep.subr.mxu0 0.0
    %1313 = vmatpush1.msra.mxu0 %v828
    %1314 = vmatprep.subr.mxu0 0.0
    %1315 = vmatpush1.msra.mxu0 %v829
    %1316 = vmatprep.subr.mxu0 0.0
    %1317 = vmatpush1.msra.mxu0 %v830
    %1318 = vmatprep.subr.mxu0 0.0
    %1319 = vmatpush1.msra.mxu0 %v831
    %1320 = vmatprep.subr.mxu0 0.0
    %1321 = vmatpush1.msra.mxu0 %v832
    %1322 = vmatprep.subr.mxu0 0.0
    %1323 = vmatpush1.msra.mxu0 %v833
    %1324 = vmatprep.subr.mxu0 0.0
    %1325 = vmatpush1.msra.mxu0 %v834
    %1326 = vmatprep.subr.mxu0 0.0
    %1327 = vmatpush1.msra.mxu0 %v835
    %1328 = vmatprep.subr.mxu0 0.0
    %1329 = vmatpush1.msra.mxu0 %v836
    %1330 = vmatprep.subr.mxu0 0.0
    %1331 = vmatpush1.msra.mxu0 %v837
    %1332 = vmatprep.subr.mxu0 0.0
    %1333 = vmatpush1.msra.mxu0 %v838
    %1334 = vmatprep.subr.mxu0 0.0
    %1335 = vmatpush1.msra.mxu0 %v839
    %1336 = vmatprep.subr.mxu0 0.0
    %1337 = vmatpush1.msra.mxu0 %v840
    %1338 = vmatprep.mubr.f32.mxu0 %v1013
    %1339 = vmatmul.mubr.f32.gmra.mrb[0].mxu0 %v1011
    %v1340 = vpop.f32.mrb[0].mxu0
    %v1341 = vadd.f32 %v1271, %v1340
    %v1342 = vpop.f32.mrb[0].mxu0
    %1343 = vdwg.mxu0
    %1344 = vmatprep.subr.mxu0 0.0
    %1345 = vmatpush1.msra.mxu0 %v841
    %1346 = vmatprep.subr.mxu0 0.0
    %1347 = vmatpush1.msra.mxu0 %v842
    %1348 = vmatprep.subr.mxu0 0.0
    %1349 = vmatpush1.msra.mxu0 %v843
    %1350 = vmatprep.subr.mxu0 0.0
    %1351 = vmatpush1.msra.mxu0 %v844
    %1352 = vmatprep.subr.mxu0 0.0
    %1353 = vmatpush1.msra.mxu0 %v845
    %1354 = vmatprep.subr.mxu0 0.0
    %1355 = vmatpush1.msra.mxu0 %v846
    %1356 = vmatprep.subr.mxu0 0.0
    %1357 = vmatpush1.msra.mxu0 %v847
    %1358 = vmatprep.subr.mxu0 0.0
    %1359 = vmatpush1.msra.mxu0 %v848
    %1360 = vmatprep.subr.mxu0 0.0
    %1361 = vmatpush1.msra.mxu0 %v849
    %1362 = vmatprep.subr.mxu0 0.0
    %1363 = vmatpush1.msra.mxu0 %v850
    %1364 = vmatprep.subr.mxu0 0.0
    %1365 = vmatpush1.msra.mxu0 %v851
    %1366 = vmatprep.subr.mxu0 0.0
    %1367 = vmatpush1.msra.mxu0 %v852
    %1368 = vmatprep.subr.mxu0 0.0
    %1369 = vmatpush1.msra.mxu0 %v853
    %1370 = vmatprep.subr.mxu0 0.0
    %1371 = vmatpush1.msra.mxu0 %v854
    %1372 = vmatprep.subr.mxu0 0.0
    %1373 = vmatpush1.msra.mxu0 %v855
    %1374 = vmatprep.subr.mxu0 0.0
    %1375 = vmatpush1.msra.mxu0 %v856
    %1376 = vmatprep.subr.mxu0 0.0
    %1377 = vmatpush1.msra.mxu0 %v857
    %1378 = vmatprep.subr.mxu0 0.0
    %1379 = vmatpush1.msra.mxu0 %v858
    %1380 = vmatprep.subr.mxu0 0.0
    %1381 = vmatpush1.msra.mxu0 %v859
    %1382 = vmatprep.subr.mxu0 0.0
    %1383 = vmatpush1.msra.mxu0 %v860
    %1384 = vmatprep.subr.mxu0 0.0
    %1385 = vmatpush1.msra.mxu0 %v861
    %1386 = vmatprep.subr.mxu0 0.0
    %1387 = vmatpush1.msra.mxu0 %v862
    %1388 = vmatprep.subr.mxu0 0.0
    %1389 = vmatpush1.msra.mxu0 %v863
    %1390 = vmatprep.subr.mxu0 0.0
    %1391 = vmatpush1.msra.mxu0 %v864
    %1392 = vmatprep.subr.mxu0 0.0
    %1393 = vmatpush1.msra.mxu0 %v865
    %1394 = vmatprep.subr.mxu0 0.0
    %1395 = vmatpush1.msra.mxu0 %v866
    %1396 = vmatprep.subr.mxu0 0.0
    %1397 = vmatpush1.msra.mxu0 %v867
    %1398 = vmatprep.subr.mxu0 0.0
    %1399 = vmatpush1.msra.mxu0 %v868
    %1400 = vmatprep.subr.mxu0 0.0
    %1401 = vmatpush1.msra.mxu0 %v869
    %1402 = vmatprep.subr.mxu0 0.0
    %1403 = vmatpush1.msra.mxu0 %v870
    %1404 = vmatprep.subr.mxu0 0.0
    %1405 = vmatpush1.msra.mxu0 %v871
    %1406 = vmatprep.subr.mxu0 0.0
    %1407 = vmatpush1.msra.mxu0 %v872
    %1408 = vmatprep.mubr.f32.mxu0 %v1029
    %1409 = vmatmul.mubr.f32.gmra.mrb[0].mxu0 %v1021
    %v1410 = vpop.f32.mrb[0].mxu0
    %v1411 = vadd.f32 %v1341, %v1410
    %v1412 = vpop.f32.mrb[0].mxu0
    %1413 = vdwg.mxu0
    %1414 = vmatprep.subr.mxu0 0.0
    %1415 = vmatpush1.msra.mxu0 %v873
    %1416 = vmatprep.subr.mxu0 0.0
    %1417 = vmatpush1.msra.mxu0 %v874
    %1418 = vmatprep.subr.mxu0 0.0
    %1419 = vmatpush1.msra.mxu0 %v875
    %1420 = vmatprep.subr.mxu0 0.0
    %1421 = vmatpush1.msra.mxu0 %v876
    %1422 = vmatprep.subr.mxu0 0.0
    %1423 = vmatpush1.msra.mxu0 %v877
    %1424 = vmatprep.subr.mxu0 0.0
    %1425 = vmatpush1.msra.mxu0 %v878
    %1426 = vmatprep.subr.mxu0 0.0
    %1427 = vmatpush1.msra.mxu0 %v879
    %1428 = vmatprep.subr.mxu0 0.0
    %1429 = vmatpush1.msra.mxu0 %v880
    %1430 = vmatprep.subr.mxu0 0.0
    %1431 = vmatpush1.msra.mxu0 %v881
    %1432 = vmatprep.subr.mxu0 0.0
    %1433 = vmatpush1.msra.mxu0 %v882
    %1434 = vmatprep.subr.mxu0 0.0
    %1435 = vmatpush1.msra.mxu0 %v883
    %1436 = vmatprep.subr.mxu0 0.0
    %1437 = vmatpush1.msra.mxu0 %v884
    %1438 = vmatprep.subr.mxu0 0.0
    %1439 = vmatpush1.msra.mxu0 %v885
    %1440 = vmatprep.subr.mxu0 0.0
    %1441 = vmatpush1.msra.mxu0 %v886
    %1442 = vmatprep.subr.mxu0 0.0
    %1443 = vmatpush1.msra.mxu0 %v887
    %1444 = vmatprep.subr.mxu0 0.0
    %1445 = vmatpush1.msra.mxu0 %v888
    %1446 = vmatprep.subr.mxu0 0.0
    %1447 = vmatpush1.msra.mxu0 %v889
    %1448 = vmatprep.subr.mxu0 0.0
    %1449 = vmatpush1.msra.mxu0 %v890
    %1450 = vmatprep.subr.mxu0 0.0
    %1451 = vmatpush1.msra.mxu0 %v891
    %1452 = vmatprep.subr.mxu0 0.0
    %1453 = vmatpush1.msra.mxu0 %v892
    %1454 = vmatprep.subr.mxu0 0.0
    %1455 = vmatpush1.msra.mxu0 %v893
    %1456 = vmatprep.subr.mxu0 0.0
    %1457 = vmatpush1.msra.mxu0 %v894
    %1458 = vmatprep.subr.mxu0 0.0
    %1459 = vmatpush1.msra.mxu0 %v895
    %1460 = vmatprep.subr.mxu0 0.0
    %1461 = vmatpush1.msra.mxu0 %v896
    %1462 = vmatprep.subr.mxu0 0.0
    %1463 = vmatpush1.msra.mxu0 %v897
    %1464 = vmatprep.subr.mxu0 0.0
    %1465 = vmatpush1.msra.mxu0 %v898
    %1466 = vmatprep.subr.mxu0 0.0
    %1467 = vmatpush1.msra.mxu0 %v899
    %1468 = vmatprep.subr.mxu0 0.0
    %1469 = vmatpush1.msra.mxu0 %v900
    %1470 = vmatprep.subr.mxu0 0.0
    %1471 = vmatpush1.msra.mxu0 %v901
    %1472 = vmatprep.subr.mxu0 0.0
    %1473 = vmatpush1.msra.mxu0 %v902
    %1474 = vmatprep.subr.mxu0 0.0
    %1475 = vmatpush1.msra.mxu0 %v903
    %1476 = vmatprep.subr.mxu0 0.0
    %1477 = vmatpush1.msra.mxu0 %v904
    %1478 = vmatprep.mubr.f32.mxu0 %v1030
    %1479 = vmatmul.mubr.f32.gmra.mrb[0].mxu0 %v1028
    %v1480 = vpop.f32.mrb[0].mxu0
    %v1481 = vadd.f32 %v1411, %v1480
    %v1482 = vpop.f32.mrb[0].mxu0
    %1483 = vdwg.mxu0
    %1484 = vmatprep.subr.mxu0 0.0
    %1485 = vmatpush1.msra.mxu0 %v905
    %1486 = vmatprep.subr.mxu0 0.0
    %1487 = vmatpush1.msra.mxu0 %v906
    %1488 = vmatprep.subr.mxu0 0.0
    %1489 = vmatpush1.msra.mxu0 %v907
    %1490 = vmatprep.subr.mxu0 0.0
    %1491 = vmatpush1.msra.mxu0 %v908
    %1492 = vmatprep.subr.mxu0 0.0
    %1493 = vmatpush1.msra.mxu0 %v909
    %1494 = vmatprep.subr.mxu0 0.0
    %1495 = vmatpush1.msra.mxu0 %v910
    %1496 = vmatprep.subr.mxu0 0.0
    %1497 = vmatpush1.msra.mxu0 %v911
    %1498 = vmatprep.subr.mxu0 0.0
    %1499 = vmatpush1.msra.mxu0 %v912
    %1500 = vmatprep.subr.mxu0 0.0
    %1501 = vmatpush1.msra.mxu0 %v913
    %1502 = vmatprep.subr.mxu0 0.0
    %1503 = vmatpush1.msra.mxu0 %v914
    %1504 = vmatprep.subr.mxu0 0.0
    %1505 = vmatpush1.msra.mxu0 %v915
    %1506 = vmatprep.subr.mxu0 0.0
    %1507 = vmatpush1.msra.mxu0 %v916
    %1508 = vmatprep.subr.mxu0 0.0
    %1509 = vmatpush1.msra.mxu0 %v917
    %1510 = vmatprep.subr.mxu0 0.0
    %1511 = vmatpush1.msra.mxu0 %v918
    %1512 = vmatprep.subr.mxu0 0.0
    %1513 = vmatpush1.msra.mxu0 %v919
    %1514 = vmatprep.subr.mxu0 0.0
    %1515 = vmatpush1.msra.mxu0 %v920
    %1516 = vmatprep.subr.mxu0 0.0
    %1517 = vmatpush1.msra.mxu0 %v921
    %1518 = vmatprep.subr.mxu0 0.0
    %1519 = vmatpush1.msra.mxu0 %v922
    %1520 = vmatprep.subr.mxu0 0.0
    %1521 = vmatpush1.msra.mxu0 %v923
    %1522 = vmatprep.subr.mxu0 0.0
    %1523 = vmatpush1.msra.mxu0 %v924
    %1524 = vmatprep.subr.mxu0 0.0
    %1525 = vmatpush1.msra.mxu0 %v925
    %1526 = vmatprep.subr.mxu0 0.0
    %1527 = vmatpush1.msra.mxu0 %v926
    %1528 = vmatprep.subr.mxu0 0.0
    %1529 = vmatpush1.msra.mxu0 %v927
    %1530 = vmatprep.subr.mxu0 0.0
    %1531 = vmatpush1.msra.mxu0 %v928
    %1532 = vmatprep.subr.mxu0 0.0
    %1533 = vmatpush1.msra.mxu0 %v929
    %1534 = vmatprep.subr.mxu0 0.0
    %1535 = vmatpush1.msra.mxu0 %v930
    %1536 = vmatprep.subr.mxu0 0.0
    %1537 = vmatpush1.msra.mxu0 %v931
    %1538 = vmatprep.subr.mxu0 0.0
    %1539 = vmatpush1.msra.mxu0 %v932
    %1540 = vmatprep.subr.mxu0 0.0
    %1541 = vmatpush1.msra.mxu0 %v933
    %1542 = vmatprep.subr.mxu0 0.0
    %1543 = vmatpush1.msra.mxu0 %v934
    %1544 = vmatprep.subr.mxu0 0.0
    %1545 = vmatpush1.msra.mxu0 %v935
    %1546 = vmatprep.subr.mxu0 0.0
    %1547 = vmatpush1.msra.mxu0 %v936
    %1548 = vmatprep.mubr.f32.mxu0 %v1046
    %1549 = vmatmul.mubr.f32.gmra.mrb[0].mxu0 %v1038
    %v1550 = vpop.f32.mrb[0].mxu0
    %v1551 = vadd.f32 %v1481, %v1550
    %v1552 = vpop.f32.mrb[0].mxu0
    %1553 = vdwg.mxu0
    %1554 = vmatprep.subr.mxu0 0.0
    %1555 = vmatpush1.msra.mxu0 %v937
    %1556 = vmatprep.subr.mxu0 0.0
    %1557 = vmatpush1.msra.mxu0 %v938
    %1558 = vmatprep.subr.mxu0 0.0
    %1559 = vmatpush1.msra.mxu0 %v939
    %1560 = vmatprep.subr.mxu0 0.0
    %1561 = vmatpush1.msra.mxu0 %v940
    %1562 = vmatprep.subr.mxu0 0.0
    %1563 = vmatpush1.msra.mxu0 %v941
    %1564 = vmatprep.subr.mxu0 0.0
    %1565 = vmatpush1.msra.mxu0 %v942
    %1566 = vmatprep.subr.mxu0 0.0
    %1567 = vmatpush1.msra.mxu0 %v943
    %1568 = vmatprep.subr.mxu0 0.0
    %1569 = vmatpush1.msra.mxu0 %v944
    %1570 = vmatprep.subr.mxu0 0.0
    %1571 = vmatpush1.msra.mxu0 %v945
    %1572 = vmatprep.subr.mxu0 0.0
    %1573 = vmatpush1.msra.mxu0 %v946
    %1574 = vmatprep.subr.mxu0 0.0
    %1575 = vmatpush1.msra.mxu0 %v947
    %1576 = vmatprep.subr.mxu0 0.0
    %1577 = vmatpush1.msra.mxu0 %v948
    %1578 = vmatprep.subr.mxu0 0.0
    %1579 = vmatpush1.msra.mxu0 %v949
    %1580 = vmatprep.subr.mxu0 0.0
    %1581 = vmatpush1.msra.mxu0 %v950
    %1582 = vmatprep.subr.mxu0 0.0
    %1583 = vmatpush1.msra.mxu0 %v951
    %1584 = vmatprep.subr.mxu0 0.0
    %1585 = vmatpush1.msra.mxu0 %v952
    %1586 = vmatprep.subr.mxu0 0.0
    %1587 = vmatpush1.msra.mxu0 %v953
    %1588 = vmatprep.subr.mxu0 0.0
    %1589 = vmatpush1.msra.mxu0 %v954
    %1590 = vmatprep.subr.mxu0 0.0
    %1591 = vmatpush1.msra.mxu0 %v955
    %1592 = vmatprep.subr.mxu0 0.0
    %1593 = vmatpush1.msra.mxu0 %v956
    %1594 = vmatprep.subr.mxu0 0.0
    %1595 = vmatpush1.msra.mxu0 %v957
    %1596 = vmatprep.subr.mxu0 0.0
    %1597 = vmatpush1.msra.mxu0 %v958
    %1598 = vmatprep.subr.mxu0 0.0
    %1599 = vmatpush1.msra.mxu0 %v959
    %1600 = vmatprep.subr.mxu0 0.0
    %1601 = vmatpush1.msra.mxu0 %v960
    %1602 = vmatprep.subr.mxu0 0.0
    %1603 = vmatpush1.msra.mxu0 %v961
    %1604 = vmatprep.subr.mxu0 0.0
    %1605 = vmatpush1.msra.mxu0 %v962
    %1606 = vmatprep.subr.mxu0 0.0
    %1607 = vmatpush1.msra.mxu0 %v963
    %1608 = vmatprep.subr.mxu0 0.0
    %1609 = vmatpush1.msra.mxu0 %v964
    %1610 = vmatprep.subr.mxu0 0.0
    %1611 = vmatpush1.msra.mxu0 %v965
    %1612 = vmatprep.subr.mxu0 0.0
    %1613 = vmatpush1.msra.mxu0 %v966
    %1614 = vmatprep.subr.mxu0 0.0
    %1615 = vmatpush1.msra.mxu0 %v967
    %1616 = vmatprep.subr.mxu0 0.0
    %1617 = vmatpush1.msra.mxu0 %v968
    %1618 = vmatprep.mubr.f32.mxu0 %v1047
    %1619 = vmatmul.mubr.f32.gmra.mrb[0].mxu0 %v1045
    %v1620 = vpop.f32.mrb[0].mxu0
    %v1621 = vadd.f32 %v1551, %v1620
    %v1622 = vpop.f32.mrb[0].mxu0
    %1623 = vdwg.mxu0
    %v1624 = vmax.f32 %v1621, 0.0
    %v1625 = vld [vmem:[%s5] sm:$0xff]
    %v1626 = vld [vmem:[%s5 + $0x8] sm:$0xff]
    %v1627 = vld [vmem:[%s5 + $0x10] sm:$0xff]
    %v1628 = vld [vmem:[%s5 + $0x18] sm:$0xff]
    %v1629 = vld [vmem:[%s6] sm:$0x1]
    %v1631 = vlaneseq
    %v1632 = vshrl.u32 %v1631, 7
    %v1633 = vsub.s32 0, %v1632
    %v1634 = vrot.slane %v1629, %v1633
    %vm1636 = vcmask 261120
    %v1638 = vsel %vm1636, %v1624, 0
    %1640 = vmatprep.subr.mxu0 0.0
    %1641 = vmatpush1.msra.mxu0 %v1625
    %1642 = vmatprep.subr.mxu0 0.0
    %1643 = vmatpush1.msra.mxu0 %v1626
    %1644 = vmatprep.subr.mxu0 0.0
    %1645 = vmatpush1.msra.mxu0 %v1627
    %1646 = vmatprep.subr.mxu0 0.0
    %1647 = vmatpush1.msra.mxu0 %v1628
    %1648 = vmatprep.subr.mxu0 0.0
    %1649 = vmatpush1.msra.mxu0 0.0
    %1650 = vmatprep.subr.mxu0 0.0
    %1651 = vmatpush1.msra.mxu0 0.0
    %1652 = vmatprep.subr.mxu0 0.0
    %1653 = vmatpush1.msra.mxu0 0.0
    %1654 = vmatprep.subr.mxu0 0.0
    %1655 = vmatpush1.msra.mxu0 0.0
    %1656 = vmatprep.subr.mxu0 0.0
    %1657 = vmatpush1.msra.mxu0 0.0
    %1658 = vmatprep.subr.mxu0 0.0
    %1659 = vmatpush1.msra.mxu0 0.0
    %1660 = vmatprep.subr.mxu0 0.0
    %1661 = vmatpush1.msra.mxu0 0.0
    %1662 = vmatprep.subr.mxu0 0.0
    %1663 = vmatpush1.msra.mxu0 0.0
    %1664 = vmatprep.subr.mxu0 0.0
    %1665 = vmatpush1.msra.mxu0 0.0
    %1666 = vmatprep.subr.mxu0 0.0
    %1667 = vmatpush1.msra.mxu0 0.0
    %1668 = vmatprep.subr.mxu0 0.0
    %1669 = vmatpush1.msra.mxu0 0.0
    %1670 = vmatprep.subr.mxu0 0.0
    %1671 = vmatpush1.msra.mxu0 0.0
    %1672 = vmatprep.subr.mxu0 0.0
    %1673 = vmatpush1.msra.mxu0 0.0
    %1674 = vmatprep.subr.mxu0 0.0
    %1675 = vmatpush1.msra.mxu0 0.0
    %1676 = vmatprep.subr.mxu0 0.0
    %1677 = vmatpush1.msra.mxu0 0.0
    %1678 = vmatprep.subr.mxu0 0.0
    %1679 = vmatpush1.msra.mxu0 0.0
    %1680 = vmatprep.subr.mxu0 0.0
    %1681 = vmatpush1.msra.mxu0 0.0
    %1682 = vmatprep.subr.mxu0 0.0
    %1683 = vmatpush1.msra.mxu0 0.0
    %1684 = vmatprep.subr.mxu0 0.0
    %1685 = vmatpush1.msra.mxu0 0.0
    %1686 = vmatprep.subr.mxu0 0.0
    %1687 = vmatpush1.msra.mxu0 0.0
    %1688 = vmatprep.subr.mxu0 0.0
    %1689 = vmatpush1.msra.mxu0 0.0
    %1690 = vmatprep.subr.mxu0 0.0
    %1691 = vmatpush1.msra.mxu0 0.0
    %1692 = vmatprep.subr.mxu0 0.0
    %1693 = vmatpush1.msra.mxu0 0.0
    %1694 = vmatprep.subr.mxu0 0.0
    %1695 = vmatpush1.msra.mxu0 0.0
    %1696 = vmatprep.subr.mxu0 0.0
    %1697 = vmatpush1.msra.mxu0 0.0
    %1698 = vmatprep.subr.mxu0 0.0
    %1699 = vmatpush1.msra.mxu0 0.0
    %1700 = vmatprep.subr.mxu0 0.0
    %1701 = vmatpush1.msra.mxu0 0.0
    %1702 = vmatprep.subr.mxu0 0.0
    %1703 = vmatpush1.msra.mxu0 0.0
    %1704 = vmatprep.mubr.f32.mxu0 0.0
    %1705 = vmatmul.mubr.f32.gmra.mrb[0].mxu0 %v1638
    %v1706 = vpop.f32.mrb[0].mxu0
    %v1707 = vadd.f32 %v1634, %v1706
    %v1708 = vpop.f32.mrb[0].mxu0
    %1709 = vdwg.mxu0
    %vm1710 = vcmask 74752
    %1711 = vst.msk [vmem:[#allocation3] sm:$0x3] %vm1710, %v1707
    // Predicated region
    $region30: #{tpu_custom_call.1} parent=1 // pred_check
      _
    $region31: #{tpu_custom_call.1} parent=1 // pred_check_branch
      %1713 = sbr.rel (0) target = $region33
    $region32: #{tpu_custom_call.1} parent=1 // pred_region
      %s1715 = ssub.s32 32, 32
      %1716 = vsyncadd [#allocation4], %s1715
      %s1718 = sshll.u32 [#allocation3], 4
      %s1719 = int_to_ptr.vmem [resolvable:$true] %s1718
      %1721 = dma.vmem_to_hbm [thread:$0]  %s1719, 32, %s7, [#allocation4]
    $region33: #{tpu_custom_call.1} parent=1 // pred_fallthru
      _
    // Predicated region
    $region34: #{tpu_custom_call.1} parent=1 // pred_check
      _
    $region35: #{tpu_custom_call.1} parent=1 // pred_check_branch
      %1723 = sbr.rel (0) target = $region37
    $region36: #{tpu_custom_call.1} parent=1 // pred_region
      %1724 = dma.done [#allocation4], 32
    $region37: #{tpu_custom_call.1} parent=1 // pred_fallthru
      _
    %1725 = vsyncpa [#allocation4], 1

</llo_original>
